<compile_context>
chip_gen: v7x
topology: tpu7x:2x2x1
jax: 0.10.0
libtpu: 0.0.40
codegen_flags: <defaults>
</compile_context>

<pallas_src>
import jax
import jax.numpy as jnp
from jax import lax
from jax.experimental import pallas as pl
from jax.experimental.pallas import tpu as pltpu

C = 1152            # channels (fixed by the module's Conv2d / BatchNorm2d)
K = 5               # depthwise kernel size
PAD = 2             # spatial padding
EPS = 1e-5          # BatchNorm eps
LANE = 128          # TPU lane width; one "lane group" = 128 channels
NGROUPS = C // LANE # 9 lane groups total


def _tensorcores_per_chip() -> int:
    """Best-effort detection of TensorCores per chip (megacore / v7x => 2)."""
    try:
        kind = jax.devices()[0].device_kind.lower().replace(" ", "")
    except Exception:
        return 1
    if any(tag in kind for tag in ("v7", "7x", "v4", "v5p")):
        return 2
    return 1


def fused_relu_dwconv_bn_kernel(x_ref, w_ref, gamma_ref, beta_ref, o_ref, xp_ref):
    """One channel block of fused ReLU -> depthwise 5x5 conv -> BN (batch stats).

    x_ref:     (G, H, W, 128)           unpadded input, G lane groups       (VMEM)
    w_ref:     (G, K*K, 1, 128)         depthwise taps, tap index = kw*K+kh (VMEM)
    gamma_ref: (G, 1, 128)              BN scale                            (VMEM)
    beta_ref:  (G, 1, 128)              BN shift                            (VMEM)
    o_ref:     (G, H, W, 128)           output                              (VMEM)
    xp_ref:    (H+2*PAD, W+2*PAD, 128)  zero-padded scratch (shared/reused) (VMEM scratch)
    """
    G, H, W, lane = x_ref.shape
    inv_n = 1.0 / float(H * W)

    # Zero the padded scratch once per invocation: the halo is never dirtied and the
    # interior is fully overwritten for every lane group.  Not gated on program_id==0
    # because VMEM scratch is per-TensorCore when the "parallel" grid is core-sharded.
    xp_ref[...] = jnp.zeros_like(xp_ref)

    def group_body(g):
        # In-kernel ReLU fused with the interior store of the zero-padded scratch.
        xp_ref[PAD:PAD + H, PAD:PAD + W, :] = jnp.maximum(x_ref[g], 0.0)

        w_g = w_ref[g]                                   # (K*K, 1, 128), tap idx = kw*K+kh
        acc = jnp.zeros((H, W, lane), jnp.float32)
        for kw in range(K):                              # 5 hoisted sublane-axis window shifts
            x_kw = xp_ref[:, kw:kw + W, :]               # (H + 2*PAD, W, 128)
            # Hoist this column's 5-tap sublane broadcast out of the MAC loop.
            w_kw = jnp.broadcast_to(w_g[kw * K:(kw + 1) * K], (K, W, lane))
            for kh in range(K):
                # Leading-dim-only broadcast inside the hot loop (free on the VPU).
                acc = acc + x_kw[kh:kh + H] * w_kw[kh]

        # BatchNorm2d, training mode (N=1): single-pass biased stats over H*W per channel.
        s = jnp.sum(acc, axis=(0, 1), keepdims=True)            # (1, 1, 128)
        ss = jnp.sum(acc * acc, axis=(0, 1), keepdims=True)     # (1, 1, 128)
        mean = s * inv_n
        var = jnp.maximum(ss * inv_n - mean * mean, 0.0)
        scale = lax.rsqrt(var + EPS) * gamma_ref[g]              # EUP rsqrt; (1, 1, 128)
        shift = beta_ref[g] - mean * scale                       # (1, 1, 128)
        o_ref[g] = (acc * scale + shift).astype(o_ref.dtype)     # single fused epilogue FMA

    if G == 1:
        group_body(0)
    else:
        @pl.loop(0, G)                                   # bounds live ranges per 128-lane group
        def _(g):
            group_body(g)


def module_forward(x_nchw, w_oihw, gamma, beta):
    """Equivalent of M.forward. x_nchw: (1, 1152, H, W); w_oihw: (1152, 1, 5, 5)."""
    N, Cin, H, W = x_nchw.shape
    assert N == 1 and Cin == C, "module fixes C=1152; BN batch stats implemented for N=1"

    # Channel-block sizing (per perf review):
    #   dual-TC chips: 128 lanes/block -> grid=(9,) "parallel" (5/4 split across TCs)
    #   single-TC chips: 384 lanes/block -> grid=(3,) (amortize per-step grid overhead)
    dual_tc = _tensorcores_per_chip() >= 2
    cb = LANE if dual_tc else 3 * LANE
    g_per_block = cb // LANE
    n_blocks = C // cb

    # Layout glue (plain XLA): channels -> (group, lane), lanes 128-dense.
    # TODO(synk): fold this transpose into the kernel to remove the standalone layout HLO.
    x_g = jnp.transpose(x_nchw[0].reshape(NGROUPS, LANE, H, W), (0, 2, 3, 1))      # (9,H,W,128)
    # (O,1,Kh,Kw) -> tap index = kw*K + kh, channels split into (group, lane).
    w_t = jnp.transpose(w_oihw[:, 0, :, :], (2, 1, 0)).reshape(K * K, NGROUPS, LANE)
    w_blk = jnp.transpose(w_t, (1, 0, 2)).reshape(NGROUPS, K * K, 1, LANE)         # (9,25,1,128)
    gamma_g = gamma.reshape(NGROUPS, 1, LANE)
    beta_g = beta.reshape(NGROUPS, 1, LANE)

    out_g = pl.pallas_call(
        fused_relu_dwconv_bn_kernel,
        out_shape=jax.ShapeDtypeStruct((NGROUPS, H, W, LANE), x_nchw.dtype),
        grid_spec=pltpu.PrefetchScalarGridSpec(
            num_scalar_prefetch=0,
            grid=(n_blocks,),
            in_specs=[
                pl.BlockSpec((g_per_block, H, W, LANE), lambda i: (i, 0, 0, 0)),       # input
                pl.BlockSpec((g_per_block, K * K, 1, LANE), lambda i: (i, 0, 0, 0)),   # taps
                pl.BlockSpec((g_per_block, 1, LANE), lambda i: (i, 0, 0)),             # gamma
                pl.BlockSpec((g_per_block, 1, LANE), lambda i: (i, 0, 0)),             # beta
            ],
            out_specs=pl.BlockSpec((g_per_block, H, W, LANE), lambda i: (i, 0, 0, 0)),
            scratch_shapes=[pltpu.VMEM((H + 2 * PAD, W + 2 * PAD, LANE), jnp.float32)],
        ),
        compiler_params=pltpu.CompilerParams(dimension_semantics=("parallel",)),
    )(x_g, w_blk, gamma_g, beta_g)

    # (9, H, W, 128) -> (C, H, W) -> NCHW
    return jnp.transpose(out_g, (0, 3, 1, 2)).reshape(C, H, W)[None]


if __name__ == "__main__":
    key = jax.random.PRNGKey(0)
    k_x, k_w, k_g, k_b = jax.random.split(key, 4)

    # Shapes implied by the module: input (1, 1152, 7, 7), depthwise weight (1152, 1, 5, 5).
    x = jax.random.normal(k_x, (1, C, 7, 7), dtype=jnp.float32)
    w = jax.random.normal(k_w, (C, 1, K, K), dtype=jnp.float32) * 0.1
    gamma = jax.random.normal(k_g, (C,), dtype=jnp.float32) * 0.1 + 1.0
    beta = jax.random.normal(k_b, (C,), dtype=jnp.float32) * 0.1

    out = jax.jit(module_forward)(x, w, gamma, beta)
    out = jax.block_until_ready(out)

    # Pure-JAX reference (ReLU -> depthwise conv -> training-mode BN) for correctness.
    x_relu = jnp.maximum(x, 0.0)
    conv = lax.conv_general_dilated(
        x_relu, w, window_strides=(1, 1), padding=((PAD, PAD), (PAD, PAD)),
        dimension_numbers=("NCHW", "OIHW", "NCHW"), feature_group_count=C)
    mu = conv.mean(axis=(0, 2, 3), keepdims=True)
    va = ((conv - mu) ** 2).mean(axis=(0, 2, 3), keepdims=True)
    ref = (conv - mu) / jnp.sqrt(va + EPS) * gamma.reshape(1, C, 1, 1) + beta.reshape(1, C, 1, 1)

    assert out.shape == (1, C, 7, 7)
    err = float(jnp.max(jnp.abs(out - ref)))
    assert jnp.allclose(out, ref, atol=1e-3, rtol=1e-3), err
    print("KERNEL_OK")
</pallas_src>

<mosaic_0001>
module attributes {stable_mosaic.version = 11 : i64} {
  func.func @fused_relu_dwconv_bn_kernel(%arg0: i32, %arg1: memref<3x7x7x128xf32, #tpu.memory_space<vmem>>, %arg2: memref<3x25x1x128xf32, #tpu.memory_space<vmem>>, %arg3: memref<3x1x128xf32, #tpu.memory_space<vmem>>, %arg4: memref<3x1x128xf32, #tpu.memory_space<vmem>>, %arg5: memref<3x7x7x128xf32, #tpu.memory_space<vmem>>, %arg6: memref<11x11x128xf32, #tpu.memory_space<vmem>>) attributes {dimension_semantics = [#tpu.dimension_semantics<parallel>], iteration_bounds = array<i64: 3>, scalar_prefetch = 0 : i64, scratch_operands = 1 : i64, tpu.core_type = #tpu.core_type<tc>, window_params = [{transform_indices = @transform_0, window_bounds = array<i64: 3, 7, 7, 128>}, {transform_indices = @transform_1, window_bounds = array<i64: 3, 25, 1, 128>}, {transform_indices = @transform_2, window_bounds = array<i64: 3, 1, 128>}, {transform_indices = @transform_3, window_bounds = array<i64: 3, 1, 128>}, {transform_indices = @transform_4, window_bounds = array<i64: 3, 7, 7, 128>}]} {
    %cst = arith.constant 0.000000e+00 : f32
    %0 = vector.broadcast %cst : f32 to vector<11x11x128xf32>
    %c0 = arith.constant 0 : index
    %c0_0 = arith.constant 0 : index
    %c0_1 = arith.constant 0 : index
    %1 = vector.load %arg6[%c0, %c0_0, %c0_1] : memref<11x11x128xf32, #tpu.memory_space<vmem>>, vector<11x11x128xf32>
    tpu.vector_store %arg6[%c0, %c0_0, %c0_1], %0 {strides = array<i32>} : memref<11x11x128xf32, #tpu.memory_space<vmem>>, vector<11x11x128xf32>,
    %c0_i32 = arith.constant 0 : i32
    %c3_i32 = arith.constant 3 : i32
    %2 = arith.addi %c0_i32, %c3_i32 : i32
    %c1_i32 = arith.constant 1 : i32
    scf.for %arg7 = %c0_i32 to %2 step %c1_i32  : i32 {
      %c1_i32_3 = arith.constant 1 : i32
      %3 = arith.muli %arg7, %c1_i32_3 : i32
      %c0_i32_4 = arith.constant 0 : i32
      %4 = arith.addi %c0_i32_4, %3 : i32
      %5 = arith.index_cast %4 : i32 to index
      %c0_5 = arith.constant 0 : index
      %c0_6 = arith.constant 0 : index
      %c0_7 = arith.constant 0 : index
      %6 = vector.load %arg1[%5, %c0_5, %c0_6, %c0_7] : memref<3x7x7x128xf32, #tpu.memory_space<vmem>>, vector<1x7x7x128xf32>
      %7 = vector.shape_cast %6 : vector<1x7x7x128xf32> to vector<7x7x128xf32>
      %cst_8 = arith.constant 0.000000e+00 : f32
      %8 = vector.broadcast %cst_8 : f32 to vector<7x7x128xf32>
      %9 = arith.maximumf %7, %8 : vector<7x7x128xf32>
      %c2 = arith.constant 2 : index
      %c2_9 = arith.constant 2 : index
      %c0_10 = arith.constant 0 : index
      %10 = vector.load %arg6[%c2, %c2_9, %c0_10] : memref<11x11x128xf32, #tpu.memory_space<vmem>>, vector<7x7x128xf32>
      tpu.vector_store %arg6[%c2, %c2_9, %c0_10], %9 {strides = array<i32>} : memref<11x11x128xf32, #tpu.memory_space<vmem>>, vector<7x7x128xf32>,
      %11 = arith.index_cast %4 : i32 to index
      %c0_11 = arith.constant 0 : index
      %c0_12 = arith.constant 0 : index
      %c0_13 = arith.constant 0 : index
      %12 = vector.load %arg2[%11, %c0_11, %c0_12, %c0_13] : memref<3x25x1x128xf32, #tpu.memory_space<vmem>>, vector<1x25x1x128xf32>
      %13 = vector.shape_cast %12 : vector<1x25x1x128xf32> to vector<25x1x128xf32>
      %cst_14 = arith.constant 0.000000e+00 : f32
      %14 = vector.broadcast %cst_14 : f32 to vector<7x7x128xf32>
      %c0_15 = arith.constant 0 : index
      %c0_16 = arith.constant 0 : index
      %c0_17 = arith.constant 0 : index
      %15 = vector.load %arg6[%c0_15, %c0_16, %c0_17] : memref<11x11x128xf32, #tpu.memory_space<vmem>>, vector<11x7x128xf32>
      %16 = vector.extract_strided_slice %13 {offsets = [0, 0, 0], sizes = [5, 1, 128], strides = [1, 1, 1]} : vector<25x1x128xf32> to vector<5x1x128xf32>
      %17 = vector.shape_cast %16 : vector<5x1x128xf32> to vector<5x1x128xf32>
      %18 = vector.broadcast %17 : vector<5x1x128xf32> to vector<5x7x128xf32>
      %19 = vector.extract_strided_slice %15 {offsets = [0, 0, 0], sizes = [7, 7, 128], strides = [1, 1, 1]} : vector<11x7x128xf32> to vector<7x7x128xf32>
      %20 = vector.extract_strided_slice %18 {offsets = [0, 0, 0], sizes = [1, 7, 128], strides = [1, 1, 1]} : vector<5x7x128xf32> to vector<1x7x128xf32>
      %21 = vector.shape_cast %20 : vector<1x7x128xf32> to vector<7x128xf32>
      %22 = vector.shape_cast %21 : vector<7x128xf32> to vector<1x7x128xf32>
      %23 = vector.broadcast %22 : vector<1x7x128xf32> to vector<7x7x128xf32>
      %24 = arith.mulf %19, %23 : vector<7x7x128xf32>
      %25 = arith.addf %14, %24 : vector<7x7x128xf32>
      %26 = vector.extract_strided_slice %15 {offsets = [1, 0, 0], sizes = [7, 7, 128], strides = [1, 1, 1]} : vector<11x7x128xf32> to vector<7x7x128xf32>
      %27 = vector.extract_strided_slice %18 {offsets = [1, 0, 0], sizes = [1, 7, 128], strides = [1, 1, 1]} : vector<5x7x128xf32> to vector<1x7x128xf32>
      %28 = vector.shape_cast %27 : vector<1x7x128xf32> to vector<7x128xf32>
      %29 = vector.shape_cast %28 : vector<7x128xf32> to vector<1x7x128xf32>
      %30 = vector.broadcast %29 : vector<1x7x128xf32> to vector<7x7x128xf32>
      %31 = arith.mulf %26, %30 : vector<7x7x128xf32>
      %32 = arith.addf %25, %31 : vector<7x7x128xf32>
      %33 = vector.extract_strided_slice %15 {offsets = [2, 0, 0], sizes = [7, 7, 128], strides = [1, 1, 1]} : vector<11x7x128xf32> to vector<7x7x128xf32>
      %34 = vector.extract_strided_slice %18 {offsets = [2, 0, 0], sizes = [1, 7, 128], strides = [1, 1, 1]} : vector<5x7x128xf32> to vector<1x7x128xf32>
      %35 = vector.shape_cast %34 : vector<1x7x128xf32> to vector<7x128xf32>
      %36 = vector.shape_cast %35 : vector<7x128xf32> to vector<1x7x128xf32>
      %37 = vector.broadcast %36 : vector<1x7x128xf32> to vector<7x7x128xf32>
      %38 = arith.mulf %33, %37 : vector<7x7x128xf32>
      %39 = arith.addf %32, %38 : vector<7x7x128xf32>
      %40 = vector.extract_strided_slice %15 {offsets = [3, 0, 0], sizes = [7, 7, 128], strides = [1, 1, 1]} : vector<11x7x128xf32> to vector<7x7x128xf32>
      %41 = vector.extract_strided_slice %18 {offsets = [3, 0, 0], sizes = [1, 7, 128], strides = [1, 1, 1]} : vector<5x7x128xf32> to vector<1x7x128xf32>
      %42 = vector.shape_cast %41 : vector<1x7x128xf32> to vector<7x128xf32>
      %43 = vector.shape_cast %42 : vector<7x128xf32> to vector<1x7x128xf32>
      %44 = vector.broadcast %43 : vector<1x7x128xf32> to vector<7x7x128xf32>
      %45 = arith.mulf %40, %44 : vector<7x7x128xf32>
      %46 = arith.addf %39, %45 : vector<7x7x128xf32>
      %47 = vector.extract_strided_slice %15 {offsets = [4, 0, 0], sizes = [7, 7, 128], strides = [1, 1, 1]} : vector<11x7x128xf32> to vector<7x7x128xf32>
      %48 = vector.extract_strided_slice %18 {offsets = [4, 0, 0], sizes = [1, 7, 128], strides = [1, 1, 1]} : vector<5x7x128xf32> to vector<1x7x128xf32>
      %49 = vector.shape_cast %48 : vector<1x7x128xf32> to vector<7x128xf32>
      %50 = vector.shape_cast %49 : vector<7x128xf32> to vector<1x7x128xf32>
      %51 = vector.broadcast %50 : vector<1x7x128xf32> to vector<7x7x128xf32>
      %52 = arith.mulf %47, %51 : vector<7x7x128xf32>
      %53 = arith.addf %46, %52 : vector<7x7x128xf32>
      %c0_18 = arith.constant 0 : index
      %c1 = arith.constant 1 : index
      %c0_19 = arith.constant 0 : index
      %54 = vector.load %arg6[%c0_18, %c1, %c0_19] : memref<11x11x128xf32, #tpu.memory_space<vmem>>, vector<11x7x128xf32>
      %55 = vector.extract_strided_slice %13 {offsets = [5, 0, 0], sizes = [5, 1, 128], strides = [1, 1, 1]} : vector<25x1x128xf32> to vector<5x1x128xf32>
      %56 = vector.shape_cast %55 : vector<5x1x128xf32> to vector<5x1x128xf32>
      %57 = vector.broadcast %56 : vector<5x1x128xf32> to vector<5x7x128xf32>
      %58 = vector.extract_strided_slice %54 {offsets = [0, 0, 0], sizes = [7, 7, 128], strides = [1, 1, 1]} : vector<11x7x128xf32> to vector<7x7x128xf32>
      %59 = vector.extract_strided_slice %57 {offsets = [0, 0, 0], sizes = [1, 7, 128], strides = [1, 1, 1]} : vector<5x7x128xf32> to vector<1x7x128xf32>
      %60 = vector.shape_cast %59 : vector<1x7x128xf32> to vector<7x128xf32>
      %61 = vector.shape_cast %60 : vector<7x128xf32> to vector<1x7x128xf32>
      %62 = vector.broadcast %61 : vector<1x7x128xf32> to vector<7x7x128xf32>
      %63 = arith.mulf %58, %62 : vector<7x7x128xf32>
      %64 = arith.addf %53, %63 : vector<7x7x128xf32>
      %65 = vector.extract_strided_slice %54 {offsets = [1, 0, 0], sizes = [7, 7, 128], strides = [1, 1, 1]} : vector<11x7x128xf32> to vector<7x7x128xf32>
      %66 = vector.extract_strided_slice %57 {offsets = [1, 0, 0], sizes = [1, 7, 128], strides = [1, 1, 1]} : vector<5x7x128xf32> to vector<1x7x128xf32>
      %67 = vector.shape_cast %66 : vector<1x7x128xf32> to vector<7x128xf32>
      %68 = vector.shape_cast %67 : vector<7x128xf32> to vector<1x7x128xf32>
      %69 = vector.broadcast %68 : vector<1x7x128xf32> to vector<7x7x128xf32>
      %70 = arith.mulf %65, %69 : vector<7x7x128xf32>
      %71 = arith.addf %64, %70 : vector<7x7x128xf32>
      %72 = vector.extract_strided_slice %54 {offsets = [2, 0, 0], sizes = [7, 7, 128], strides = [1, 1, 1]} : vector<11x7x128xf32> to vector<7x7x128xf32>
      %73 = vector.extract_strided_slice %57 {offsets = [2, 0, 0], sizes = [1, 7, 128], strides = [1, 1, 1]} : vector<5x7x128xf32> to vector<1x7x128xf32>
      %74 = vector.shape_cast %73 : vector<1x7x128xf32> to vector<7x128xf32>
      %75 = vector.shape_cast %74 : vector<7x128xf32> to vector<1x7x128xf32>
      %76 = vector.broadcast %75 : vector<1x7x128xf32> to vector<7x7x128xf32>
      %77 = arith.mulf %72, %76 : vector<7x7x128xf32>
      %78 = arith.addf %71, %77 : vector<7x7x128xf32>
      %79 = vector.extract_strided_slice %54 {offsets = [3, 0, 0], sizes = [7, 7, 128], strides = [1, 1, 1]} : vector<11x7x128xf32> to vector<7x7x128xf32>
      %80 = vector.extract_strided_slice %57 {offsets = [3, 0, 0], sizes = [1, 7, 128], strides = [1, 1, 1]} : vector<5x7x128xf32> to vector<1x7x128xf32>
      %81 = vector.shape_cast %80 : vector<1x7x128xf32> to vector<7x128xf32>
      %82 = vector.shape_cast %81 : vector<7x128xf32> to vector<1x7x128xf32>
      %83 = vector.broadcast %82 : vector<1x7x128xf32> to vector<7x7x128xf32>
      %84 = arith.mulf %79, %83 : vector<7x7x128xf32>
      %85 = arith.addf %78, %84 : vector<7x7x128xf32>
      %86 = vector.extract_strided_slice %54 {offsets = [4, 0, 0], sizes = [7, 7, 128], strides = [1, 1, 1]} : vector<11x7x128xf32> to vector<7x7x128xf32>
      %87 = vector.extract_strided_slice %57 {offsets = [4, 0, 0], sizes = [1, 7, 128], strides = [1, 1, 1]} : vector<5x7x128xf32> to vector<1x7x128xf32>
      %88 = vector.shape_cast %87 : vector<1x7x128xf32> to vector<7x128xf32>
      %89 = vector.shape_cast %88 : vector<7x128xf32> to vector<1x7x128xf32>
      %90 = vector.broadcast %89 : vector<1x7x128xf32> to vector<7x7x128xf32>
      %91 = arith.mulf %86, %90 : vector<7x7x128xf32>
      %92 = arith.addf %85, %91 : vector<7x7x128xf32>
      %c0_20 = arith.constant 0 : index
      %c2_21 = arith.constant 2 : index
      %c0_22 = arith.constant 0 : index
      %93 = vector.load %arg6[%c0_20, %c2_21, %c0_22] : memref<11x11x128xf32, #tpu.memory_space<vmem>>, vector<11x7x128xf32>
      %94 = vector.extract_strided_slice %13 {offsets = [10, 0, 0], sizes = [5, 1, 128], strides = [1, 1, 1]} : vector<25x1x128xf32> to vector<5x1x128xf32>
      %95 = vector.shape_cast %94 : vector<5x1x128xf32> to vector<5x1x128xf32>
      %96 = vector.broadcast %95 : vector<5x1x128xf32> to vector<5x7x128xf32>
      %97 = vector.extract_strided_slice %93 {offsets = [0, 0, 0], sizes = [7, 7, 128], strides = [1, 1, 1]} : vector<11x7x128xf32> to vector<7x7x128xf32>
      %98 = vector.extract_strided_slice %96 {offsets = [0, 0, 0], sizes = [1, 7, 128], strides = [1, 1, 1]} : vector<5x7x128xf32> to vector<1x7x128xf32>
      %99 = vector.shape_cast %98 : vector<1x7x128xf32> to vector<7x128xf32>
      %100 = vector.shape_cast %99 : vector<7x128xf32> to vector<1x7x128xf32>
      %101 = vector.broadcast %100 : vector<1x7x128xf32> to vector<7x7x128xf32>
      %102 = arith.mulf %97, %101 : vector<7x7x128xf32>
      %103 = arith.addf %92, %102 : vector<7x7x128xf32>
      %104 = vector.extract_strided_slice %93 {offsets = [1, 0, 0], sizes = [7, 7, 128], strides = [1, 1, 1]} : vector<11x7x128xf32> to vector<7x7x128xf32>
      %105 = vector.extract_strided_slice %96 {offsets = [1, 0, 0], sizes = [1, 7, 128], strides = [1, 1, 1]} : vector<5x7x128xf32> to vector<1x7x128xf32>
      %106 = vector.shape_cast %105 : vector<1x7x128xf32> to vector<7x128xf32>
      %107 = vector.shape_cast %106 : vector<7x128xf32> to vector<1x7x128xf32>
      %108 = vector.broadcast %107 : vector<1x7x128xf32> to vector<7x7x128xf32>
      %109 = arith.mulf %104, %108 : vector<7x7x128xf32>
      %110 = arith.addf %103, %109 : vector<7x7x128xf32>
      %111 = vector.extract_strided_slice %93 {offsets = [2, 0, 0], sizes = [7, 7, 128], strides = [1, 1, 1]} : vector<11x7x128xf32> to vector<7x7x128xf32>
      %112 = vector.extract_strided_slice %96 {offsets = [2, 0, 0], sizes = [1, 7, 128], strides = [1, 1, 1]} : vector<5x7x128xf32> to vector<1x7x128xf32>
      %113 = vector.shape_cast %112 : vector<1x7x128xf32> to vector<7x128xf32>
      %114 = vector.shape_cast %113 : vector<7x128xf32> to vector<1x7x128xf32>
      %115 = vector.broadcast %114 : vector<1x7x128xf32> to vector<7x7x128xf32>
      %116 = arith.mulf %111, %115 : vector<7x7x128xf32>
      %117 = arith.addf %110, %116 : vector<7x7x128xf32>
      %118 = vector.extract_strided_slice %93 {offsets = [3, 0, 0], sizes = [7, 7, 128], strides = [1, 1, 1]} : vector<11x7x128xf32> to vector<7x7x128xf32>
      %119 = vector.extract_strided_slice %96 {offsets = [3, 0, 0], sizes = [1, 7, 128], strides = [1, 1, 1]} : vector<5x7x128xf32> to vector<1x7x128xf32>
      %120 = vector.shape_cast %119 : vector<1x7x128xf32> to vector<7x128xf32>
      %121 = vector.shape_cast %120 : vector<7x128xf32> to vector<1x7x128xf32>
      %122 = vector.broadcast %121 : vector<1x7x128xf32> to vector<7x7x128xf32>
      %123 = arith.mulf %118, %122 : vector<7x7x128xf32>
      %124 = arith.addf %117, %123 : vector<7x7x128xf32>
      %125 = vector.extract_strided_slice %93 {offsets = [4, 0, 0], sizes = [7, 7, 128], strides = [1, 1, 1]} : vector<11x7x128xf32> to vector<7x7x128xf32>
      %126 = vector.extract_strided_slice %96 {offsets = [4, 0, 0], sizes = [1, 7, 128], strides = [1, 1, 1]} : vector<5x7x128xf32> to vector<1x7x128xf32>
      %127 = vector.shape_cast %126 : vector<1x7x128xf32> to vector<7x128xf32>
      %128 = vector.shape_cast %127 : vector<7x128xf32> to vector<1x7x128xf32>
      %129 = vector.broadcast %128 : vector<1x7x128xf32> to vector<7x7x128xf32>
      %130 = arith.mulf %125, %129 : vector<7x7x128xf32>
      %131 = arith.addf %124, %130 : vector<7x7x128xf32>
      %c0_23 = arith.constant 0 : index
      %c3 = arith.constant 3 : index
      %c0_24 = arith.constant 0 : index
      %132 = vector.load %arg6[%c0_23, %c3, %c0_24] : memref<11x11x128xf32, #tpu.memory_space<vmem>>, vector<11x7x128xf32>
      %133 = vector.extract_strided_slice %13 {offsets = [15, 0, 0], sizes = [5, 1, 128], strides = [1, 1, 1]} : vector<25x1x128xf32> to vector<5x1x128xf32>
      %134 = vector.shape_cast %133 : vector<5x1x128xf32> to vector<5x1x128xf32>
      %135 = vector.broadcast %134 : vector<5x1x128xf32> to vector<5x7x128xf32>
      %136 = vector.extract_strided_slice %132 {offsets = [0, 0, 0], sizes = [7, 7, 128], strides = [1, 1, 1]} : vector<11x7x128xf32> to vector<7x7x128xf32>
      %137 = vector.extract_strided_slice %135 {offsets = [0, 0, 0], sizes = [1, 7, 128], strides = [1, 1, 1]} : vector<5x7x128xf32> to vector<1x7x128xf32>
      %138 = vector.shape_cast %137 : vector<1x7x128xf32> to vector<7x128xf32>
      %139 = vector.shape_cast %138 : vector<7x128xf32> to vector<1x7x128xf32>
      %140 = vector.broadcast %139 : vector<1x7x128xf32> to vector<7x7x128xf32>
      %141 = arith.mulf %136, %140 : vector<7x7x128xf32>
      %142 = arith.addf %131, %141 : vector<7x7x128xf32>
      %143 = vector.extract_strided_slice %132 {offsets = [1, 0, 0], sizes = [7, 7, 128], strides = [1, 1, 1]} : vector<11x7x128xf32> to vector<7x7x128xf32>
      %144 = vector.extract_strided_slice %135 {offsets = [1, 0, 0], sizes = [1, 7, 128], strides = [1, 1, 1]} : vector<5x7x128xf32> to vector<1x7x128xf32>
      %145 = vector.shape_cast %144 : vector<1x7x128xf32> to vector<7x128xf32>
      %146 = vector.shape_cast %145 : vector<7x128xf32> to vector<1x7x128xf32>
      %147 = vector.broadcast %146 : vector<1x7x128xf32> to vector<7x7x128xf32>
      %148 = arith.mulf %143, %147 : vector<7x7x128xf32>
      %149 = arith.addf %142, %148 : vector<7x7x128xf32>
      %150 = vector.extract_strided_slice %132 {offsets = [2, 0, 0], sizes = [7, 7, 128], strides = [1, 1, 1]} : vector<11x7x128xf32> to vector<7x7x128xf32>
      %151 = vector.extract_strided_slice %135 {offsets = [2, 0, 0], sizes = [1, 7, 128], strides = [1, 1, 1]} : vector<5x7x128xf32> to vector<1x7x128xf32>
      %152 = vector.shape_cast %151 : vector<1x7x128xf32> to vector<7x128xf32>
      %153 = vector.shape_cast %152 : vector<7x128xf32> to vector<1x7x128xf32>
      %154 = vector.broadcast %153 : vector<1x7x128xf32> to vector<7x7x128xf32>
      %155 = arith.mulf %150, %154 : vector<7x7x128xf32>
      %156 = arith.addf %149, %155 : vector<7x7x128xf32>
      %157 = vector.extract_strided_slice %132 {offsets = [3, 0, 0], sizes = [7, 7, 128], strides = [1, 1, 1]} : vector<11x7x128xf32> to vector<7x7x128xf32>
      %158 = vector.extract_strided_slice %135 {offsets = [3, 0, 0], sizes = [1, 7, 128], strides = [1, 1, 1]} : vector<5x7x128xf32> to vector<1x7x128xf32>
      %159 = vector.shape_cast %158 : vector<1x7x128xf32> to vector<7x128xf32>
      %160 = vector.shape_cast %159 : vector<7x128xf32> to vector<1x7x128xf32>
      %161 = vector.broadcast %160 : vector<1x7x128xf32> to vector<7x7x128xf32>
      %162 = arith.mulf %157, %161 : vector<7x7x128xf32>
      %163 = arith.addf %156, %162 : vector<7x7x128xf32>
      %164 = vector.extract_strided_slice %132 {offsets = [4, 0, 0], sizes = [7, 7, 128], strides = [1, 1, 1]} : vector<11x7x128xf32> to vector<7x7x128xf32>
      %165 = vector.extract_strided_slice %135 {offsets = [4, 0, 0], sizes = [1, 7, 128], strides = [1, 1, 1]} : vector<5x7x128xf32> to vector<1x7x128xf32>
      %166 = vector.shape_cast %165 : vector<1x7x128xf32> to vector<7x128xf32>
      %167 = vector.shape_cast %166 : vector<7x128xf32> to vector<1x7x128xf32>
      %168 = vector.broadcast %167 : vector<1x7x128xf32> to vector<7x7x128xf32>
      %169 = arith.mulf %164, %168 : vector<7x7x128xf32>
      %170 = arith.addf %163, %169 : vector<7x7x128xf32>
      %c0_25 = arith.constant 0 : index
      %c4 = arith.constant 4 : index
      %c0_26 = arith.constant 0 : index
      %171 = vector.load %arg6[%c0_25, %c4, %c0_26] : memref<11x11x128xf32, #tpu.memory_space<vmem>>, vector<11x7x128xf32>
      %172 = vector.extract_strided_slice %13 {offsets = [20, 0, 0], sizes = [5, 1, 128], strides = [1, 1, 1]} : vector<25x1x128xf32> to vector<5x1x128xf32>
      %173 = vector.shape_cast %172 : vector<5x1x128xf32> to vector<5x1x128xf32>
      %174 = vector.broadcast %173 : vector<5x1x128xf32> to vector<5x7x128xf32>
      %175 = vector.extract_strided_slice %171 {offsets = [0, 0, 0], sizes = [7, 7, 128], strides = [1, 1, 1]} : vector<11x7x128xf32> to vector<7x7x128xf32>
      %176 = vector.extract_strided_slice %174 {offsets = [0, 0, 0], sizes = [1, 7, 128], strides = [1, 1, 1]} : vector<5x7x128xf32> to vector<1x7x128xf32>
      %177 = vector.shape_cast %176 : vector<1x7x128xf32> to vector<7x128xf32>
      %178 = vector.shape_cast %177 : vector<7x128xf32> to vector<1x7x128xf32>
      %179 = vector.broadcast %178 : vector<1x7x128xf32> to vector<7x7x128xf32>
      %180 = arith.mulf %175, %179 : vector<7x7x128xf32>
      %181 = arith.addf %170, %180 : vector<7x7x128xf32>
      %182 = vector.extract_strided_slice %171 {offsets = [1, 0, 0], sizes = [7, 7, 128], strides = [1, 1, 1]} : vector<11x7x128xf32> to vector<7x7x128xf32>
      %183 = vector.extract_strided_slice %174 {offsets = [1, 0, 0], sizes = [1, 7, 128], strides = [1, 1, 1]} : vector<5x7x128xf32> to vector<1x7x128xf32>
      %184 = vector.shape_cast %183 : vector<1x7x128xf32> to vector<7x128xf32>
      %185 = vector.shape_cast %184 : vector<7x128xf32> to vector<1x7x128xf32>
      %186 = vector.broadcast %185 : vector<1x7x128xf32> to vector<7x7x128xf32>
      %187 = arith.mulf %182, %186 : vector<7x7x128xf32>
      %188 = arith.addf %181, %187 : vector<7x7x128xf32>
      %189 = vector.extract_strided_slice %171 {offsets = [2, 0, 0], sizes = [7, 7, 128], strides = [1, 1, 1]} : vector<11x7x128xf32> to vector<7x7x128xf32>
      %190 = vector.extract_strided_slice %174 {offsets = [2, 0, 0], sizes = [1, 7, 128], strides = [1, 1, 1]} : vector<5x7x128xf32> to vector<1x7x128xf32>
      %191 = vector.shape_cast %190 : vector<1x7x128xf32> to vector<7x128xf32>
      %192 = vector.shape_cast %191 : vector<7x128xf32> to vector<1x7x128xf32>
      %193 = vector.broadcast %192 : vector<1x7x128xf32> to vector<7x7x128xf32>
      %194 = arith.mulf %189, %193 : vector<7x7x128xf32>
      %195 = arith.addf %188, %194 : vector<7x7x128xf32>
      %196 = vector.extract_strided_slice %171 {offsets = [3, 0, 0], sizes = [7, 7, 128], strides = [1, 1, 1]} : vector<11x7x128xf32> to vector<7x7x128xf32>
      %197 = vector.extract_strided_slice %174 {offsets = [3, 0, 0], sizes = [1, 7, 128], strides = [1, 1, 1]} : vector<5x7x128xf32> to vector<1x7x128xf32>
      %198 = vector.shape_cast %197 : vector<1x7x128xf32> to vector<7x128xf32>
      %199 = vector.shape_cast %198 : vector<7x128xf32> to vector<1x7x128xf32>
      %200 = vector.broadcast %199 : vector<1x7x128xf32> to vector<7x7x128xf32>
      %201 = arith.mulf %196, %200 : vector<7x7x128xf32>
      %202 = arith.addf %195, %201 : vector<7x7x128xf32>
      %203 = vector.extract_strided_slice %171 {offsets = [4, 0, 0], sizes = [7, 7, 128], strides = [1, 1, 1]} : vector<11x7x128xf32> to vector<7x7x128xf32>
      %204 = vector.extract_strided_slice %174 {offsets = [4, 0, 0], sizes = [1, 7, 128], strides = [1, 1, 1]} : vector<5x7x128xf32> to vector<1x7x128xf32>
      %205 = vector.shape_cast %204 : vector<1x7x128xf32> to vector<7x128xf32>
      %206 = vector.shape_cast %205 : vector<7x128xf32> to vector<1x7x128xf32>
      %207 = vector.broadcast %206 : vector<1x7x128xf32> to vector<7x7x128xf32>
      %208 = arith.mulf %203, %207 : vector<7x7x128xf32>
      %209 = arith.addf %202, %208 : vector<7x7x128xf32>
      %cst_27 = arith.constant dense<0.000000e+00> : vector<128xf32>
      %210 = vector.multi_reduction <add>, %209, %cst_27 [0, 1] : vector<7x7x128xf32> to vector<128xf32>
      %211 = vector.shape_cast %210 : vector<128xf32> to vector<1x1x128xf32>
      %212 = arith.mulf %209, %209 : vector<7x7x128xf32>
      %cst_28 = arith.constant dense<0.000000e+00> : vector<128xf32>
      %213 = vector.multi_reduction <add>, %212, %cst_28 [0, 1] : vector<7x7x128xf32> to vector<128xf32>
      %214 = vector.shape_cast %213 : vector<128xf32> to vector<1x1x128xf32>
      %cst_29 = arith.constant 0.0204081628 : f32
      %215 = vector.broadcast %cst_29 : f32 to vector<1x1x128xf32>
      %216 = arith.mulf %211, %215 : vector<1x1x128xf32>
      %cst_30 = arith.constant 0.0204081628 : f32
      %217 = vector.broadcast %cst_30 : f32 to vector<1x1x128xf32>
      %218 = arith.mulf %214, %217 : vector<1x1x128xf32>
      %219 = arith.mulf %216, %216 : vector<1x1x128xf32>
      %220 = arith.subf %218, %219 : vector<1x1x128xf32>
      %cst_31 = arith.constant 0.000000e+00 : f32
      %221 = vector.broadcast %cst_31 : f32 to vector<1x1x128xf32>
      %222 = arith.maximumf %220, %221 : vector<1x1x128xf32>
      %cst_32 = arith.constant 9.99999974E-6 : f32
      %223 = vector.broadcast %cst_32 : f32 to vector<1x1x128xf32>
      %224 = arith.addf %222, %223 : vector<1x1x128xf32>
      %225 = math.rsqrt %224 : vector<1x1x128xf32>
      %226 = arith.index_cast %4 : i32 to index
      %c0_33 = arith.constant 0 : index
      %c0_34 = arith.constant 0 : index
      %227 = vector.load %arg3[%226, %c0_33, %c0_34] : memref<3x1x128xf32, #tpu.memory_space<vmem>>, vector<1x1x128xf32>
      %228 = vector.shape_cast %227 : vector<1x1x128xf32> to vector<1x128xf32>
      %229 = vector.shape_cast %228 : vector<1x128xf32> to vector<1x1x128xf32>
      %230 = arith.mulf %225, %229 : vector<1x1x128xf32>
      %231 = arith.index_cast %4 : i32 to index
      %c0_35 = arith.constant 0 : index
      %c0_36 = arith.constant 0 : index
      %232 = vector.load %arg4[%231, %c0_35, %c0_36] : memref<3x1x128xf32, #tpu.memory_space<vmem>>, vector<1x1x128xf32>
      %233 = vector.shape_cast %232 : vector<1x1x128xf32> to vector<1x128xf32>
      %234 = arith.mulf %216, %230 : vector<1x1x128xf32>
      %235 = vector.shape_cast %233 : vector<1x128xf32> to vector<1x1x128xf32>
      %236 = arith.subf %235, %234 : vector<1x1x128xf32>
      %237 = vector.broadcast %230 : vector<1x1x128xf32> to vector<7x7x128xf32>
      %238 = arith.mulf %209, %237 : vector<7x7x128xf32>
      %239 = vector.broadcast %236 : vector<1x1x128xf32> to vector<7x7x128xf32>
      %240 = arith.addf %238, %239 : vector<7x7x128xf32>
      %241 = arith.index_cast %4 : i32 to index
      %c0_37 = arith.constant 0 : index
      %c0_38 = arith.constant 0 : index
      %c0_39 = arith.constant 0 : index
      %242 = vector.load %arg5[%241, %c0_37, %c0_38, %c0_39] : memref<3x7x7x128xf32, #tpu.memory_space<vmem>>, vector<1x7x7x128xf32>
      %243 = vector.shape_cast %242 : vector<1x7x7x128xf32> to vector<7x7x128xf32>
      %244 = vector.shape_cast %240 : vector<7x7x128xf32> to vector<1x7x7x128xf32>
      tpu.vector_store %arg5[%241, %c0_37, %c0_38, %c0_39], %244 {strides = array<i32>} : memref<3x7x7x128xf32, #tpu.memory_space<vmem>>, vector<1x7x7x128xf32>,
    }
    %c3_i32_2 = arith.constant 3 : i32
    return
  }
  func.func @transform_0(%arg0: i32) -> (i32, i32, i32, i32) {
    %c0_i32 = arith.constant 0 : i32
    %c0_i32_0 = arith.constant 0 : i32
    %c0_i32_1 = arith.constant 0 : i32
    %c0_i32_2 = arith.constant 0 : i32
    return %arg0, %c0_i32, %c0_i32_0, %c0_i32_1 : i32, i32, i32, i32
  }
  func.func @transform_1(%arg0: i32) -> (i32, i32, i32, i32) {
    %c0_i32 = arith.constant 0 : i32
    %c0_i32_0 = arith.constant 0 : i32
    %c0_i32_1 = arith.constant 0 : i32
    %c0_i32_2 = arith.constant 0 : i32
    return %arg0, %c0_i32, %c0_i32_0, %c0_i32_1 : i32, i32, i32, i32
  }
  func.func @transform_2(%arg0: i32) -> (i32, i32, i32) {
    %c0_i32 = arith.constant 0 : i32
    %c0_i32_0 = arith.constant 0 : i32
    %c0_i32_1 = arith.constant 0 : i32
    return %arg0, %c0_i32, %c0_i32_0 : i32, i32, i32
  }
  func.func @transform_3(%arg0: i32) -> (i32, i32, i32) {
    %c0_i32 = arith.constant 0 : i32
    %c0_i32_0 = arith.constant 0 : i32
    %c0_i32_1 = arith.constant 0 : i32
    return %arg0, %c0_i32, %c0_i32_0 : i32, i32, i32
  }
  func.func @transform_4(%arg0: i32) -> (i32, i32, i32, i32) {
    %c0_i32 = arith.constant 0 : i32
    %c0_i32_0 = arith.constant 0 : i32
    %c0_i32_1 = arith.constant 0 : i32
    %c0_i32_2 = arith.constant 0 : i32
    return %arg0, %c0_i32, %c0_i32_0, %c0_i32_1 : i32, i32, i32, i32
  }
}

</mosaic_0001>

<llo_original>
// kernel: squeeze.2
$region0: #{squeeze.2}
  %s0 = inlined_call_operand.vmem [shape: f32[1152,7,7], index: 0, kind: input, shape index: {}]
  %s1 = inlined_call_operand.vmem [shape: f32[9,128,7,7], index: 1, kind: output, shape index: {}]
  %v2 = vld [vmem:[%s0] sm:$0x7f]
  %3 = vst [vmem:[%s1] ss:$16 sm:$0x3] %v2
  %4 = vst [vmem:[%s1] ss:$16 sm:$0xc] %v2
  %5 = vst [vmem:[%s1] ss:$16 sm:$0x30] %v2
  %s6 = scalar_lea.vmem %s1, 90
  %7 = vst [vmem:[%s6] sm:$0x40] %v2
  %s8 = scalar_lea.vmem %s0, 8
  %v9 = vld [vmem:[%s8] sm:$0x7f]
  %s10 = scalar_lea.vmem %s1, 1
  %11 = vst [vmem:[%s10] ss:$16 sm:$0x3] %v9
  %s12 = scalar_lea.vmem %s1, 1
  %13 = vst [vmem:[%s12] ss:$16 sm:$0xc] %v9
  %s14 = scalar_lea.vmem %s1, 1
  %15 = vst [vmem:[%s14] ss:$16 sm:$0x30] %v9
  %s16 = scalar_lea.vmem %s1, 91
  %17 = vst [vmem:[%s16] sm:$0x40] %v9
  %s18 = scalar_lea.vmem %s0, 16
  %v19 = vld [vmem:[%s18] sm:$0x7f]
  %s20 = scalar_lea.vmem %s1, 2
  %21 = vst [vmem:[%s20] ss:$16 sm:$0x3] %v19
  %s22 = scalar_lea.vmem %s1, 2
  %23 = vst [vmem:[%s22] ss:$16 sm:$0xc] %v19
  %s24 = scalar_lea.vmem %s1, 2
  %25 = vst [vmem:[%s24] ss:$16 sm:$0x30] %v19
  %s26 = scalar_lea.vmem %s1, 92
  %27 = vst [vmem:[%s26] sm:$0x40] %v19
  %s28 = scalar_lea.vmem %s0, 24
  %v29 = vld [vmem:[%s28] sm:$0x7f]
  %s30 = scalar_lea.vmem %s1, 3
  %31 = vst [vmem:[%s30] ss:$16 sm:$0x3] %v29
  %s32 = scalar_lea.vmem %s1, 3
  %33 = vst [vmem:[%s32] ss:$16 sm:$0xc] %v29
  %s34 = scalar_lea.vmem %s1, 3
  %35 = vst [vmem:[%s34] ss:$16 sm:$0x30] %v29
  %s36 = scalar_lea.vmem %s1, 93
  %37 = vst [vmem:[%s36] sm:$0x40] %v29
  %s38 = scalar_lea.vmem %s0, 32
  %v39 = vld [vmem:[%s38] sm:$0x7f]
  %s40 = scalar_lea.vmem %s1, 4
  %41 = vst [vmem:[%s40] ss:$16 sm:$0x3] %v39
  %s42 = scalar_lea.vmem %s1, 4
  %43 = vst [vmem:[%s42] ss:$16 sm:$0xc] %v39
  %s44 = scalar_lea.vmem %s1, 4
  %45 = vst [vmem:[%s44] ss:$16 sm:$0x30] %v39
  %s46 = scalar_lea.vmem %s1, 94
  %47 = vst [vmem:[%s46] sm:$0x40] %v39
  %s48 = scalar_lea.vmem %s0, 40
  %v49 = vld [vmem:[%s48] sm:$0x7f]
  %s50 = scalar_lea.vmem %s1, 5
  %51 = vst [vmem:[%s50] ss:$16 sm:$0x3] %v49
  %s52 = scalar_lea.vmem %s1, 5
  %53 = vst [vmem:[%s52] ss:$16 sm:$0xc] %v49
  %s54 = scalar_lea.vmem %s1, 5
  %55 = vst [vmem:[%s54] ss:$16 sm:$0x30] %v49
  %s56 = scalar_lea.vmem %s1, 95
  %57 = vst [vmem:[%s56] sm:$0x40] %v49
  %s58 = scalar_lea.vmem %s0, 48
  %v59 = vld [vmem:[%s58] sm:$0x7f]
  %s60 = scalar_lea.vmem %s1, 6
  %61 = vst [vmem:[%s60] ss:$16 sm:$0x3] %v59
  %s62 = scalar_lea.vmem %s1, 6
  %63 = vst [vmem:[%s62] ss:$16 sm:$0xc] %v59
  %s64 = scalar_lea.vmem %s1, 6
  %65 = vst [vmem:[%s64] ss:$16 sm:$0x30] %v59
  %s66 = scalar_lea.vmem %s1, 96
  %67 = vst [vmem:[%s66] sm:$0x40] %v59
  %s68 = scalar_lea.vmem %s0, 56
  %v69 = vld [vmem:[%s68] sm:$0x7f]
  %s70 = scalar_lea.vmem %s1, 7
  %71 = vst [vmem:[%s70] ss:$16 sm:$0x3] %v69
  %s72 = scalar_lea.vmem %s1, 7
  %73 = vst [vmem:[%s72] ss:$16 sm:$0xc] %v69
  %s74 = scalar_lea.vmem %s1, 7
  %75 = vst [vmem:[%s74] ss:$16 sm:$0x30] %v69
  %s76 = scalar_lea.vmem %s1, 97
  %77 = vst [vmem:[%s76] sm:$0x40] %v69
  %s78 = scalar_lea.vmem %s0, 64
  %v79 = vld [vmem:[%s78] sm:$0x7f]
  %s80 = scalar_lea.vmem %s1, 8
  %81 = vst [vmem:[%s80] ss:$16 sm:$0x3] %v79
  %s82 = scalar_lea.vmem %s1, 8
  %83 = vst [vmem:[%s82] ss:$16 sm:$0xc] %v79
  %s84 = scalar_lea.vmem %s1, 8
  %85 = vst [vmem:[%s84] ss:$16 sm:$0x30] %v79
  %s86 = scalar_lea.vmem %s1, 98
  %87 = vst [vmem:[%s86] sm:$0x40] %v79
  %s88 = scalar_lea.vmem %s0, 72
  %v89 = vld [vmem:[%s88] sm:$0x7f]
  %s90 = scalar_lea.vmem %s1, 112
  %91 = vst [vmem:[%s90] ss:$16 sm:$0x3] %v89
  %s92 = scalar_lea.vmem %s1, 112
  %93 = vst [vmem:[%s92] ss:$16 sm:$0xc] %v89
  %s94 = scalar_lea.vmem %s1, 112
  %95 = vst [vmem:[%s94] ss:$16 sm:$0x30] %v89
  %s96 = scalar_lea.vmem %s1, 202
  %97 = vst [vmem:[%s96] sm:$0x40] %v89
  %s98 = scalar_lea.vmem %s0, 80
  %v99 = vld [vmem:[%s98] sm:$0x7f]
  %s100 = scalar_lea.vmem %s1, 113
  %101 = vst [vmem:[%s100] ss:$16 sm:$0x3] %v99
  %s102 = scalar_lea.vmem %s1, 113
  %103 = vst [vmem:[%s102] ss:$16 sm:$0xc] %v99
  %s104 = scalar_lea.vmem %s1, 113
  %105 = vst [vmem:[%s104] ss:$16 sm:$0x30] %v99
  %s106 = scalar_lea.vmem %s1, 203
  %107 = vst [vmem:[%s106] sm:$0x40] %v99
  %s108 = scalar_lea.vmem %s0, 88
  %v109 = vld [vmem:[%s108] sm:$0x7f]
  %s110 = scalar_lea.vmem %s1, 114
  %111 = vst [vmem:[%s110] ss:$16 sm:$0x3] %v109
  %s112 = scalar_lea.vmem %s1, 114
  %113 = vst [vmem:[%s112] ss:$16 sm:$0xc] %v109
  %s114 = scalar_lea.vmem %s1, 114
  %115 = vst [vmem:[%s114] ss:$16 sm:$0x30] %v109
  %s116 = scalar_lea.vmem %s1, 204
  %117 = vst [vmem:[%s116] sm:$0x40] %v109
  %s118 = scalar_lea.vmem %s0, 96
  %v119 = vld [vmem:[%s118] sm:$0x7f]
  %s120 = scalar_lea.vmem %s1, 115
  %121 = vst [vmem:[%s120] ss:$16 sm:$0x3] %v119
  %s122 = scalar_lea.vmem %s1, 115
  %123 = vst [vmem:[%s122] ss:$16 sm:$0xc] %v119
  %s124 = scalar_lea.vmem %s1, 115
  %125 = vst [vmem:[%s124] ss:$16 sm:$0x30] %v119
  %s126 = scalar_lea.vmem %s1, 205
  %127 = vst [vmem:[%s126] sm:$0x40] %v119
  %s128 = scalar_lea.vmem %s0, 104
  %v129 = vld [vmem:[%s128] sm:$0x7f]
  %s130 = scalar_lea.vmem %s1, 116
  %131 = vst [vmem:[%s130] ss:$16 sm:$0x3] %v129
  %s132 = scalar_lea.vmem %s1, 116
  %133 = vst [vmem:[%s132] ss:$16 sm:$0xc] %v129
  %s134 = scalar_lea.vmem %s1, 116
  %135 = vst [vmem:[%s134] ss:$16 sm:$0x30] %v129
  %s136 = scalar_lea.vmem %s1, 206
  %137 = vst [vmem:[%s136] sm:$0x40] %v129
  %s138 = scalar_lea.vmem %s0, 112
  %v139 = vld [vmem:[%s138] sm:$0x7f]
  %s140 = scalar_lea.vmem %s1, 117
  %141 = vst [vmem:[%s140] ss:$16 sm:$0x3] %v139
  %s142 = scalar_lea.vmem %s1, 117
  %143 = vst [vmem:[%s142] ss:$16 sm:$0xc] %v139
  %s144 = scalar_lea.vmem %s1, 117
  %145 = vst [vmem:[%s144] ss:$16 sm:$0x30] %v139
  %s146 = scalar_lea.vmem %s1, 207
  %147 = vst [vmem:[%s146] sm:$0x40] %v139
  %s148 = scalar_lea.vmem %s0, 120
  %v149 = vld [vmem:[%s148] sm:$0x7f]
  %s150 = scalar_lea.vmem %s1, 118
  %151 = vst [vmem:[%s150] ss:$16 sm:$0x3] %v149
  %s152 = scalar_lea.vmem %s1, 118
  %153 = vst [vmem:[%s152] ss:$16 sm:$0xc] %v149
  %s154 = scalar_lea.vmem %s1, 118
  %155 = vst [vmem:[%s154] ss:$16 sm:$0x30] %v149
  %s156 = scalar_lea.vmem %s1, 208
  %157 = vst [vmem:[%s156] sm:$0x40] %v149
  %s158 = scalar_lea.vmem %s0, 128
  %v159 = vld [vmem:[%s158] sm:$0x7f]
  %s160 = scalar_lea.vmem %s1, 119
  %161 = vst [vmem:[%s160] ss:$16 sm:$0x3] %v159
  %s162 = scalar_lea.vmem %s1, 119
  %163 = vst [vmem:[%s162] ss:$16 sm:$0xc] %v159
  %s164 = scalar_lea.vmem %s1, 119
  %165 = vst [vmem:[%s164] ss:$16 sm:$0x30] %v159
  %s166 = scalar_lea.vmem %s1, 209
  %167 = vst [vmem:[%s166] sm:$0x40] %v159
  %s168 = scalar_lea.vmem %s0, 136
  %v169 = vld [vmem:[%s168] sm:$0x7f]
  %s170 = scalar_lea.vmem %s1, 120
  %171 = vst [vmem:[%s170] ss:$16 sm:$0x3] %v169
  %s172 = scalar_lea.vmem %s1, 120
  %173 = vst [vmem:[%s172] ss:$16 sm:$0xc] %v169
  %s174 = scalar_lea.vmem %s1, 120
  %175 = vst [vmem:[%s174] ss:$16 sm:$0x30] %v169
  %s176 = scalar_lea.vmem %s1, 210
  %177 = vst [vmem:[%s176] sm:$0x40] %v169
  %s178 = scalar_lea.vmem %s0, 144
  %v179 = vld [vmem:[%s178] sm:$0x7f]
  %s180 = scalar_lea.vmem %s1, 224
  %181 = vst [vmem:[%s180] ss:$16 sm:$0x3] %v179
  %s182 = scalar_lea.vmem %s1, 224
  %183 = vst [vmem:[%s182] ss:$16 sm:$0xc] %v179
  %s184 = scalar_lea.vmem %s1, 224
  %185 = vst [vmem:[%s184] ss:$16 sm:$0x30] %v179
  %s186 = scalar_lea.vmem %s1, 314
  %187 = vst [vmem:[%s186] sm:$0x40] %v179
  %s188 = scalar_lea.vmem %s0, 152
  %v189 = vld [vmem:[%s188] sm:$0x7f]
  %s190 = scalar_lea.vmem %s1, 225
  %191 = vst [vmem:[%s190] ss:$16 sm:$0x3] %v189
  %s192 = scalar_lea.vmem %s1, 225
  %193 = vst [vmem:[%s192] ss:$16 sm:$0xc] %v189
  %s194 = scalar_lea.vmem %s1, 225
  %195 = vst [vmem:[%s194] ss:$16 sm:$0x30] %v189
  %s196 = scalar_lea.vmem %s1, 315
  %197 = vst [vmem:[%s196] sm:$0x40] %v189
  %s198 = scalar_lea.vmem %s0, 160
  %v199 = vld [vmem:[%s198] sm:$0x7f]
  %s200 = scalar_lea.vmem %s1, 226
  %201 = vst [vmem:[%s200] ss:$16 sm:$0x3] %v199
  %s202 = scalar_lea.vmem %s1, 226
  %203 = vst [vmem:[%s202] ss:$16 sm:$0xc] %v199
  %s204 = scalar_lea.vmem %s1, 226
  %205 = vst [vmem:[%s204] ss:$16 sm:$0x30] %v199
  %s206 = scalar_lea.vmem %s1, 316
  %207 = vst [vmem:[%s206] sm:$0x40] %v199
  %s208 = scalar_lea.vmem %s0, 168
  %v209 = vld [vmem:[%s208] sm:$0x7f]
  %s210 = scalar_lea.vmem %s1, 227
  %211 = vst [vmem:[%s210] ss:$16 sm:$0x3] %v209
  %s212 = scalar_lea.vmem %s1, 227
  %213 = vst [vmem:[%s212] ss:$16 sm:$0xc] %v209
  %s214 = scalar_lea.vmem %s1, 227
  %215 = vst [vmem:[%s214] ss:$16 sm:$0x30] %v209
  %s216 = scalar_lea.vmem %s1, 317
  %217 = vst [vmem:[%s216] sm:$0x40] %v209
  %s218 = scalar_lea.vmem %s0, 176
  %v219 = vld [vmem:[%s218] sm:$0x7f]
  %s220 = scalar_lea.vmem %s1, 228
  %221 = vst [vmem:[%s220] ss:$16 sm:$0x3] %v219
  %s222 = scalar_lea.vmem %s1, 228
  %223 = vst [vmem:[%s222] ss:$16 sm:$0xc] %v219
  %s224 = scalar_lea.vmem %s1, 228
  %225 = vst [vmem:[%s224] ss:$16 sm:$0x30] %v219
  %s226 = scalar_lea.vmem %s1, 318
  %227 = vst [vmem:[%s226] sm:$0x40] %v219
  %s228 = scalar_lea.vmem %s0, 184
  %v229 = vld [vmem:[%s228] sm:$0x7f]
  %s230 = scalar_lea.vmem %s1, 229
  %231 = vst [vmem:[%s230] ss:$16 sm:$0x3] %v229
  %s232 = scalar_lea.vmem %s1, 229
  %233 = vst [vmem:[%s232] ss:$16 sm:$0xc] %v229
  %s234 = scalar_lea.vmem %s1, 229
  %235 = vst [vmem:[%s234] ss:$16 sm:$0x30] %v229
  %s236 = scalar_lea.vmem %s1, 319
  %237 = vst [vmem:[%s236] sm:$0x40] %v229
  %s238 = scalar_lea.vmem %s0, 192
  %v239 = vld [vmem:[%s238] sm:$0x7f]
  %s240 = scalar_lea.vmem %s1, 230
  %241 = vst [vmem:[%s240] ss:$16 sm:$0x3] %v239
  %s242 = scalar_lea.vmem %s1, 230
  %243 = vst [vmem:[%s242] ss:$16 sm:$0xc] %v239
  %s244 = scalar_lea.vmem %s1, 230
  %245 = vst [vmem:[%s244] ss:$16 sm:$0x30] %v239
  %s246 = scalar_lea.vmem %s1, 320
  %247 = vst [vmem:[%s246] sm:$0x40] %v239
  %s248 = scalar_lea.vmem %s0, 200
  %v249 = vld [vmem:[%s248] sm:$0x7f]
  %s250 = scalar_lea.vmem %s1, 231
  %251 = vst [vmem:[%s250] ss:$16 sm:$0x3] %v249
  %s252 = scalar_lea.vmem %s1, 231
  %253 = vst [vmem:[%s252] ss:$16 sm:$0xc] %v249
  %s254 = scalar_lea.vmem %s1, 231
  %255 = vst [vmem:[%s254] ss:$16 sm:$0x30] %v249
  %s256 = scalar_lea.vmem %s1, 321
  %257 = vst [vmem:[%s256] sm:$0x40] %v249
  %s258 = scalar_lea.vmem %s0, 208
  %v259 = vld [vmem:[%s258] sm:$0x7f]
  %s260 = scalar_lea.vmem %s1, 232
  %261 = vst [vmem:[%s260] ss:$16 sm:$0x3] %v259
  %s262 = scalar_lea.vmem %s1, 232
  %263 = vst [vmem:[%s262] ss:$16 sm:$0xc] %v259
  %s264 = scalar_lea.vmem %s1, 232
  %265 = vst [vmem:[%s264] ss:$16 sm:$0x30] %v259
  %s266 = scalar_lea.vmem %s1, 322
  %267 = vst [vmem:[%s266] sm:$0x40] %v259
  %s268 = scalar_lea.vmem %s0, 216
  %v269 = vld [vmem:[%s268] sm:$0x7f]
  %s270 = scalar_lea.vmem %s1, 336
  %271 = vst [vmem:[%s270] ss:$16 sm:$0x3] %v269
  %s272 = scalar_lea.vmem %s1, 336
  %273 = vst [vmem:[%s272] ss:$16 sm:$0xc] %v269
  %s274 = scalar_lea.vmem %s1, 336
  %275 = vst [vmem:[%s274] ss:$16 sm:$0x30] %v269
  %s276 = scalar_lea.vmem %s1, 426
  %277 = vst [vmem:[%s276] sm:$0x40] %v269
  %s278 = scalar_lea.vmem %s0, 224
  %v279 = vld [vmem:[%s278] sm:$0x7f]
  %s280 = scalar_lea.vmem %s1, 337
  %281 = vst [vmem:[%s280] ss:$16 sm:$0x3] %v279
  %s282 = scalar_lea.vmem %s1, 337
  %283 = vst [vmem:[%s282] ss:$16 sm:$0xc] %v279
  %s284 = scalar_lea.vmem %s1, 337
  %285 = vst [vmem:[%s284] ss:$16 sm:$0x30] %v279
  %s286 = scalar_lea.vmem %s1, 427
  %287 = vst [vmem:[%s286] sm:$0x40] %v279
  %s288 = scalar_lea.vmem %s0, 232
  %v289 = vld [vmem:[%s288] sm:$0x7f]
  %s290 = scalar_lea.vmem %s1, 338
  %291 = vst [vmem:[%s290] ss:$16 sm:$0x3] %v289
  %s292 = scalar_lea.vmem %s1, 338
  %293 = vst [vmem:[%s292] ss:$16 sm:$0xc] %v289
  %s294 = scalar_lea.vmem %s1, 338
  %295 = vst [vmem:[%s294] ss:$16 sm:$0x30] %v289
  %s296 = scalar_lea.vmem %s1, 428
  %297 = vst [vmem:[%s296] sm:$0x40] %v289
  %s298 = scalar_lea.vmem %s0, 240
  %v299 = vld [vmem:[%s298] sm:$0x7f]
  %s300 = scalar_lea.vmem %s1, 339
  %301 = vst [vmem:[%s300] ss:$16 sm:$0x3] %v299
  %s302 = scalar_lea.vmem %s1, 339
  %303 = vst [vmem:[%s302] ss:$16 sm:$0xc] %v299
  %s304 = scalar_lea.vmem %s1, 339
  %305 = vst [vmem:[%s304] ss:$16 sm:$0x30] %v299
  %s306 = scalar_lea.vmem %s1, 429
  %307 = vst [vmem:[%s306] sm:$0x40] %v299
  %s308 = scalar_lea.vmem %s0, 248
  %v309 = vld [vmem:[%s308] sm:$0x7f]
  %s310 = scalar_lea.vmem %s1, 340
  %311 = vst [vmem:[%s310] ss:$16 sm:$0x3] %v309
  %s312 = scalar_lea.vmem %s1, 340
  %313 = vst [vmem:[%s312] ss:$16 sm:$0xc] %v309
  %s314 = scalar_lea.vmem %s1, 340
  %315 = vst [vmem:[%s314] ss:$16 sm:$0x30] %v309
  %s316 = scalar_lea.vmem %s1, 430
  %317 = vst [vmem:[%s316] sm:$0x40] %v309
  %s318 = scalar_lea.vmem %s0, 256
  %v319 = vld [vmem:[%s318] sm:$0x7f]
  %s320 = scalar_lea.vmem %s1, 341
  %321 = vst [vmem:[%s320] ss:$16 sm:$0x3] %v319
  %s322 = scalar_lea.vmem %s1, 341
  %323 = vst [vmem:[%s322] ss:$16 sm:$0xc] %v319
  %s324 = scalar_lea.vmem %s1, 341
  %325 = vst [vmem:[%s324] ss:$16 sm:$0x30] %v319
  %s326 = scalar_lea.vmem %s1, 431
  %327 = vst [vmem:[%s326] sm:$0x40] %v319
  %s328 = scalar_lea.vmem %s0, 264
  %v329 = vld [vmem:[%s328] sm:$0x7f]
  %s330 = scalar_lea.vmem %s1, 342
  %331 = vst [vmem:[%s330] ss:$16 sm:$0x3] %v329
  %s332 = scalar_lea.vmem %s1, 342
  %333 = vst [vmem:[%s332] ss:$16 sm:$0xc] %v329
  %s334 = scalar_lea.vmem %s1, 342
  %335 = vst [vmem:[%s334] ss:$16 sm:$0x30] %v329
  %s336 = scalar_lea.vmem %s1, 432
  %337 = vst [vmem:[%s336] sm:$0x40] %v329
  %s338 = scalar_lea.vmem %s0, 272
  %v339 = vld [vmem:[%s338] sm:$0x7f]
  %s340 = scalar_lea.vmem %s1, 343
  %341 = vst [vmem:[%s340] ss:$16 sm:$0x3] %v339
  %s342 = scalar_lea.vmem %s1, 343
  %343 = vst [vmem:[%s342] ss:$16 sm:$0xc] %v339
  %s344 = scalar_lea.vmem %s1, 343
  %345 = vst [vmem:[%s344] ss:$16 sm:$0x30] %v339
  %s346 = scalar_lea.vmem %s1, 433
  %347 = vst [vmem:[%s346] sm:$0x40] %v339
  %s348 = scalar_lea.vmem %s0, 280
  %v349 = vld [vmem:[%s348] sm:$0x7f]
  %s350 = scalar_lea.vmem %s1, 344
  %351 = vst [vmem:[%s350] ss:$16 sm:$0x3] %v349
  %s352 = scalar_lea.vmem %s1, 344
  %353 = vst [vmem:[%s352] ss:$16 sm:$0xc] %v349
  %s354 = scalar_lea.vmem %s1, 344
  %355 = vst [vmem:[%s354] ss:$16 sm:$0x30] %v349
  %s356 = scalar_lea.vmem %s1, 434
  %357 = vst [vmem:[%s356] sm:$0x40] %v349
  %s358 = scalar_lea.vmem %s0, 288
  %v359 = vld [vmem:[%s358] sm:$0x7f]
  %s360 = scalar_lea.vmem %s1, 448
  %361 = vst [vmem:[%s360] ss:$16 sm:$0x3] %v359
  %s362 = scalar_lea.vmem %s1, 448
  %363 = vst [vmem:[%s362] ss:$16 sm:$0xc] %v359
  %s364 = scalar_lea.vmem %s1, 448
  %365 = vst [vmem:[%s364] ss:$16 sm:$0x30] %v359
  %s366 = scalar_lea.vmem %s1, 538
  %367 = vst [vmem:[%s366] sm:$0x40] %v359
  %s368 = scalar_lea.vmem %s0, 296
  %v369 = vld [vmem:[%s368] sm:$0x7f]
  %s370 = scalar_lea.vmem %s1, 449
  %371 = vst [vmem:[%s370] ss:$16 sm:$0x3] %v369
  %s372 = scalar_lea.vmem %s1, 449
  %373 = vst [vmem:[%s372] ss:$16 sm:$0xc] %v369
  %s374 = scalar_lea.vmem %s1, 449
  %375 = vst [vmem:[%s374] ss:$16 sm:$0x30] %v369
  %s376 = scalar_lea.vmem %s1, 539
  %377 = vst [vmem:[%s376] sm:$0x40] %v369
  %s378 = scalar_lea.vmem %s0, 304
  %v379 = vld [vmem:[%s378] sm:$0x7f]
  %s380 = scalar_lea.vmem %s1, 450
  %381 = vst [vmem:[%s380] ss:$16 sm:$0x3] %v379
  %s382 = scalar_lea.vmem %s1, 450
  %383 = vst [vmem:[%s382] ss:$16 sm:$0xc] %v379
  %s384 = scalar_lea.vmem %s1, 450
  %385 = vst [vmem:[%s384] ss:$16 sm:$0x30] %v379
  %s386 = scalar_lea.vmem %s1, 540
  %387 = vst [vmem:[%s386] sm:$0x40] %v379
  %s388 = scalar_lea.vmem %s0, 312
  %v389 = vld [vmem:[%s388] sm:$0x7f]
  %s390 = scalar_lea.vmem %s1, 451
  %391 = vst [vmem:[%s390] ss:$16 sm:$0x3] %v389
  %s392 = scalar_lea.vmem %s1, 451
  %393 = vst [vmem:[%s392] ss:$16 sm:$0xc] %v389
  %s394 = scalar_lea.vmem %s1, 451
  %395 = vst [vmem:[%s394] ss:$16 sm:$0x30] %v389
  %s396 = scalar_lea.vmem %s1, 541
  %397 = vst [vmem:[%s396] sm:$0x40] %v389
  %s398 = scalar_lea.vmem %s0, 320
  %v399 = vld [vmem:[%s398] sm:$0x7f]
  %s400 = scalar_lea.vmem %s1, 452
  %401 = vst [vmem:[%s400] ss:$16 sm:$0x3] %v399
  %s402 = scalar_lea.vmem %s1, 452
  %403 = vst [vmem:[%s402] ss:$16 sm:$0xc] %v399
  %s404 = scalar_lea.vmem %s1, 452
  %405 = vst [vmem:[%s404] ss:$16 sm:$0x30] %v399
  %s406 = scalar_lea.vmem %s1, 542
  %407 = vst [vmem:[%s406] sm:$0x40] %v399
  %s408 = scalar_lea.vmem %s0, 328
  %v409 = vld [vmem:[%s408] sm:$0x7f]
  %s410 = scalar_lea.vmem %s1, 453
  %411 = vst [vmem:[%s410] ss:$16 sm:$0x3] %v409
  %s412 = scalar_lea.vmem %s1, 453
  %413 = vst [vmem:[%s412] ss:$16 sm:$0xc] %v409
  %s414 = scalar_lea.vmem %s1, 453
  %415 = vst [vmem:[%s414] ss:$16 sm:$0x30] %v409
  %s416 = scalar_lea.vmem %s1, 543
  %417 = vst [vmem:[%s416] sm:$0x40] %v409
  %s418 = scalar_lea.vmem %s0, 336
  %v419 = vld [vmem:[%s418] sm:$0x7f]
  %s420 = scalar_lea.vmem %s1, 454
  %421 = vst [vmem:[%s420] ss:$16 sm:$0x3] %v419
  %s422 = scalar_lea.vmem %s1, 454
  %423 = vst [vmem:[%s422] ss:$16 sm:$0xc] %v419
  %s424 = scalar_lea.vmem %s1, 454
  %425 = vst [vmem:[%s424] ss:$16 sm:$0x30] %v419
  %s426 = scalar_lea.vmem %s1, 544
  %427 = vst [vmem:[%s426] sm:$0x40] %v419
  %s428 = scalar_lea.vmem %s0, 344
  %v429 = vld [vmem:[%s428] sm:$0x7f]
  %s430 = scalar_lea.vmem %s1, 455
  %431 = vst [vmem:[%s430] ss:$16 sm:$0x3] %v429
  %s432 = scalar_lea.vmem %s1, 455
  %433 = vst [vmem:[%s432] ss:$16 sm:$0xc] %v429
  %s434 = scalar_lea.vmem %s1, 455
  %435 = vst [vmem:[%s434] ss:$16 sm:$0x30] %v429
  %s436 = scalar_lea.vmem %s1, 545
  %437 = vst [vmem:[%s436] sm:$0x40] %v429
  %s438 = scalar_lea.vmem %s0, 352
  %v439 = vld [vmem:[%s438] sm:$0x7f]
  %s440 = scalar_lea.vmem %s1, 456
  %441 = vst [vmem:[%s440] ss:$16 sm:$0x3] %v439
  %s442 = scalar_lea.vmem %s1, 456
  %443 = vst [vmem:[%s442] ss:$16 sm:$0xc] %v439
  %s444 = scalar_lea.vmem %s1, 456
  %445 = vst [vmem:[%s444] ss:$16 sm:$0x30] %v439
  %s446 = scalar_lea.vmem %s1, 546
  %447 = vst [vmem:[%s446] sm:$0x40] %v439
  %s448 = scalar_lea.vmem %s0, 360
  %v449 = vld [vmem:[%s448] sm:$0x7f]
  %s450 = scalar_lea.vmem %s1, 560
  %451 = vst [vmem:[%s450] ss:$16 sm:$0x3] %v449
  %s452 = scalar_lea.vmem %s1, 560
  %453 = vst [vmem:[%s452] ss:$16 sm:$0xc] %v449
  %s454 = scalar_lea.vmem %s1, 560
  %455 = vst [vmem:[%s454] ss:$16 sm:$0x30] %v449
  %s456 = scalar_lea.vmem %s1, 650
  %457 = vst [vmem:[%s456] sm:$0x40] %v449
  %s458 = scalar_lea.vmem %s0, 368
  %v459 = vld [vmem:[%s458] sm:$0x7f]
  %s460 = scalar_lea.vmem %s1, 561
  %461 = vst [vmem:[%s460] ss:$16 sm:$0x3] %v459
  %s462 = scalar_lea.vmem %s1, 561
  %463 = vst [vmem:[%s462] ss:$16 sm:$0xc] %v459
  %s464 = scalar_lea.vmem %s1, 561
  %465 = vst [vmem:[%s464] ss:$16 sm:$0x30] %v459
  %s466 = scalar_lea.vmem %s1, 651
  %467 = vst [vmem:[%s466] sm:$0x40] %v459
  %s468 = scalar_lea.vmem %s0, 376
  %v469 = vld [vmem:[%s468] sm:$0x7f]
  %s470 = scalar_lea.vmem %s1, 562
  %471 = vst [vmem:[%s470] ss:$16 sm:$0x3] %v469
  %s472 = scalar_lea.vmem %s1, 562
  %473 = vst [vmem:[%s472] ss:$16 sm:$0xc] %v469
  %s474 = scalar_lea.vmem %s1, 562
  %475 = vst [vmem:[%s474] ss:$16 sm:$0x30] %v469
  %s476 = scalar_lea.vmem %s1, 652
  %477 = vst [vmem:[%s476] sm:$0x40] %v469
  %s478 = scalar_lea.vmem %s0, 384
  %v479 = vld [vmem:[%s478] sm:$0x7f]
  %s480 = scalar_lea.vmem %s1, 563
  %481 = vst [vmem:[%s480] ss:$16 sm:$0x3] %v479
  %s482 = scalar_lea.vmem %s1, 563
  %483 = vst [vmem:[%s482] ss:$16 sm:$0xc] %v479
  %s484 = scalar_lea.vmem %s1, 563
  %485 = vst [vmem:[%s484] ss:$16 sm:$0x30] %v479
  %s486 = scalar_lea.vmem %s1, 653
  %487 = vst [vmem:[%s486] sm:$0x40] %v479
  %s488 = scalar_lea.vmem %s0, 392
  %v489 = vld [vmem:[%s488] sm:$0x7f]
  %s490 = scalar_lea.vmem %s1, 564
  %491 = vst [vmem:[%s490] ss:$16 sm:$0x3] %v489
  %s492 = scalar_lea.vmem %s1, 564
  %493 = vst [vmem:[%s492] ss:$16 sm:$0xc] %v489
  %s494 = scalar_lea.vmem %s1, 564
  %495 = vst [vmem:[%s494] ss:$16 sm:$0x30] %v489
  %s496 = scalar_lea.vmem %s1, 654
  %497 = vst [vmem:[%s496] sm:$0x40] %v489
  %s498 = scalar_lea.vmem %s0, 400
  %v499 = vld [vmem:[%s498] sm:$0x7f]
  %s500 = scalar_lea.vmem %s1, 565
  %501 = vst [vmem:[%s500] ss:$16 sm:$0x3] %v499
  %s502 = scalar_lea.vmem %s1, 565
  %503 = vst [vmem:[%s502] ss:$16 sm:$0xc] %v499
  %s504 = scalar_lea.vmem %s1, 565
  %505 = vst [vmem:[%s504] ss:$16 sm:$0x30] %v499
  %s506 = scalar_lea.vmem %s1, 655
  %507 = vst [vmem:[%s506] sm:$0x40] %v499
  %s508 = scalar_lea.vmem %s0, 408
  %v509 = vld [vmem:[%s508] sm:$0x7f]
  %s510 = scalar_lea.vmem %s1, 566
  %511 = vst [vmem:[%s510] ss:$16 sm:$0x3] %v509
  %s512 = scalar_lea.vmem %s1, 566
  %513 = vst [vmem:[%s512] ss:$16 sm:$0xc] %v509
  %s514 = scalar_lea.vmem %s1, 566
  %515 = vst [vmem:[%s514] ss:$16 sm:$0x30] %v509
  %s516 = scalar_lea.vmem %s1, 656
  %517 = vst [vmem:[%s516] sm:$0x40] %v509
  %s518 = scalar_lea.vmem %s0, 416
  %v519 = vld [vmem:[%s518] sm:$0x7f]
  %s520 = scalar_lea.vmem %s1, 567
  %521 = vst [vmem:[%s520] ss:$16 sm:$0x3] %v519
  %s522 = scalar_lea.vmem %s1, 567
  %523 = vst [vmem:[%s522] ss:$16 sm:$0xc] %v519
  %s524 = scalar_lea.vmem %s1, 567
  %525 = vst [vmem:[%s524] ss:$16 sm:$0x30] %v519
  %s526 = scalar_lea.vmem %s1, 657
  %527 = vst [vmem:[%s526] sm:$0x40] %v519
  %s528 = scalar_lea.vmem %s0, 424
  %v529 = vld [vmem:[%s528] sm:$0x7f]
  %s530 = scalar_lea.vmem %s1, 568
  %531 = vst [vmem:[%s530] ss:$16 sm:$0x3] %v529
  %s532 = scalar_lea.vmem %s1, 568
  %533 = vst [vmem:[%s532] ss:$16 sm:$0xc] %v529
  %s534 = scalar_lea.vmem %s1, 568
  %535 = vst [vmem:[%s534] ss:$16 sm:$0x30] %v529
  %s536 = scalar_lea.vmem %s1, 658
  %537 = vst [vmem:[%s536] sm:$0x40] %v529
  %s538 = scalar_lea.vmem %s0, 432
  %v539 = vld [vmem:[%s538] sm:$0x7f]
  %s540 = scalar_lea.vmem %s1, 672
  %541 = vst [vmem:[%s540] ss:$16 sm:$0x3] %v539
  %s542 = scalar_lea.vmem %s1, 672
  %543 = vst [vmem:[%s542] ss:$16 sm:$0xc] %v539
  %s544 = scalar_lea.vmem %s1, 672
  %545 = vst [vmem:[%s544] ss:$16 sm:$0x30] %v539
  %s546 = scalar_lea.vmem %s1, 762
  %547 = vst [vmem:[%s546] sm:$0x40] %v539
  %s548 = scalar_lea.vmem %s0, 440
  %v549 = vld [vmem:[%s548] sm:$0x7f]
  %s550 = scalar_lea.vmem %s1, 673
  %551 = vst [vmem:[%s550] ss:$16 sm:$0x3] %v549
  %s552 = scalar_lea.vmem %s1, 673
  %553 = vst [vmem:[%s552] ss:$16 sm:$0xc] %v549
  %s554 = scalar_lea.vmem %s1, 673
  %555 = vst [vmem:[%s554] ss:$16 sm:$0x30] %v549
  %s556 = scalar_lea.vmem %s1, 763
  %557 = vst [vmem:[%s556] sm:$0x40] %v549
  %s558 = scalar_lea.vmem %s0, 448
  %v559 = vld [vmem:[%s558] sm:$0x7f]
  %s560 = scalar_lea.vmem %s1, 674
  %561 = vst [vmem:[%s560] ss:$16 sm:$0x3] %v559
  %s562 = scalar_lea.vmem %s1, 674
  %563 = vst [vmem:[%s562] ss:$16 sm:$0xc] %v559
  %s564 = scalar_lea.vmem %s1, 674
  %565 = vst [vmem:[%s564] ss:$16 sm:$0x30] %v559
  %s566 = scalar_lea.vmem %s1, 764
  %567 = vst [vmem:[%s566] sm:$0x40] %v559
  %s568 = scalar_lea.vmem %s0, 456
  %v569 = vld [vmem:[%s568] sm:$0x7f]
  %s570 = scalar_lea.vmem %s1, 675
  %571 = vst [vmem:[%s570] ss:$16 sm:$0x3] %v569
  %s572 = scalar_lea.vmem %s1, 675
  %573 = vst [vmem:[%s572] ss:$16 sm:$0xc] %v569
  %s574 = scalar_lea.vmem %s1, 675
  %575 = vst [vmem:[%s574] ss:$16 sm:$0x30] %v569
  %s576 = scalar_lea.vmem %s1, 765
  %577 = vst [vmem:[%s576] sm:$0x40] %v569
  %s578 = scalar_lea.vmem %s0, 464
  %v579 = vld [vmem:[%s578] sm:$0x7f]
  %s580 = scalar_lea.vmem %s1, 676
  %581 = vst [vmem:[%s580] ss:$16 sm:$0x3] %v579
  %s582 = scalar_lea.vmem %s1, 676
  %583 = vst [vmem:[%s582] ss:$16 sm:$0xc] %v579
  %s584 = scalar_lea.vmem %s1, 676
  %585 = vst [vmem:[%s584] ss:$16 sm:$0x30] %v579
  %s586 = scalar_lea.vmem %s1, 766
  %587 = vst [vmem:[%s586] sm:$0x40] %v579
  %s588 = scalar_lea.vmem %s0, 472
  %v589 = vld [vmem:[%s588] sm:$0x7f]
  %s590 = scalar_lea.vmem %s1, 677
  %591 = vst [vmem:[%s590] ss:$16 sm:$0x3] %v589
  %s592 = scalar_lea.vmem %s1, 677
  %593 = vst [vmem:[%s592] ss:$16 sm:$0xc] %v589
  %s594 = scalar_lea.vmem %s1, 677
  %595 = vst [vmem:[%s594] ss:$16 sm:$0x30] %v589
  %s596 = scalar_lea.vmem %s1, 767
  %597 = vst [vmem:[%s596] sm:$0x40] %v589
  %s598 = scalar_lea.vmem %s0, 480
  %v599 = vld [vmem:[%s598] sm:$0x7f]
  %s600 = scalar_lea.vmem %s1, 678
  %601 = vst [vmem:[%s600] ss:$16 sm:$0x3] %v599
  %s602 = scalar_lea.vmem %s1, 678
  %603 = vst [vmem:[%s602] ss:$16 sm:$0xc] %v599
  %s604 = scalar_lea.vmem %s1, 678
  %605 = vst [vmem:[%s604] ss:$16 sm:$0x30] %v599
  %s606 = scalar_lea.vmem %s1, 768
  %607 = vst [vmem:[%s606] sm:$0x40] %v599
  %s608 = scalar_lea.vmem %s0, 488
  %v609 = vld [vmem:[%s608] sm:$0x7f]
  %s610 = scalar_lea.vmem %s1, 679
  %611 = vst [vmem:[%s610] ss:$16 sm:$0x3] %v609
  %s612 = scalar_lea.vmem %s1, 679
  %613 = vst [vmem:[%s612] ss:$16 sm:$0xc] %v609
  %s614 = scalar_lea.vmem %s1, 679
  %615 = vst [vmem:[%s614] ss:$16 sm:$0x30] %v609
  %s616 = scalar_lea.vmem %s1, 769
  %617 = vst [vmem:[%s616] sm:$0x40] %v609
  %s618 = scalar_lea.vmem %s0, 496
  %v619 = vld [vmem:[%s618] sm:$0x7f]
  %s620 = scalar_lea.vmem %s1, 680
  %621 = vst [vmem:[%s620] ss:$16 sm:$0x3] %v619
  %s622 = scalar_lea.vmem %s1, 680
  %623 = vst [vmem:[%s622] ss:$16 sm:$0xc] %v619
  %s624 = scalar_lea.vmem %s1, 680
  %625 = vst [vmem:[%s624] ss:$16 sm:$0x30] %v619
  %s626 = scalar_lea.vmem %s1, 770
  %627 = vst [vmem:[%s626] sm:$0x40] %v619

// kernel: module_forward.1
$region0: #{module_forward.1}
  #allocation0 [shape = 'u32[]', space=smem, size = 0x4, offset = 0x4, fixed_abs, tag = 'smem constant byte address 0x4 - core index']
  #allocation1 [shape = 'u32[144,128]{1,0:T(1,128)}', space=vmem, size = 0x12000, scoped, tag = 'internal scratch']
  #allocation2 [shape = 'f32[11,11,128]{2,1,0:T(8,128)}', space=vmem, size = 0x16000, scoped, tag = 'scratch operand']
  %s0 = inlined_call_operand.vmem [shape: f32[9,7,7,128], index: 0, kind: input, shape index: {}]
  %s1 = inlined_call_operand.vmem [shape: f32[9,25,1,128], index: 1, kind: input, shape index: {}]
  %s2 = inlined_call_operand.vmem [shape: f32[9,1,128], index: 2, kind: input, shape index: {}]
  %s3 = inlined_call_operand.vmem [shape: f32[9,1,128], index: 3, kind: input, shape index: {}]
  %s4 = inlined_call_operand.vmem [shape: f32[9,7,7,128], index: 4, kind: output, shape index: {}]
  %s5 = sld [smem:[#allocation0]]
  $region56: #{module_forward.1} parent=0
    _
  %s7 = ssub.s32 1, %s5
  %s8 = scalar_select 0, %s7, %s5
  loop: start=0, step=1, limit=5
  $region2: #{module_forward.1} parent=0 // loop_pre_header
    _
  $region3: #{module_forward.1} parent=0 // loop_header
    %s10 = sphi 0, %s14
    %p11 = scmp.ge.s32.totalorder %s10, 5
    %s20 = sphi 0, %s22
    %s23 = sphi 0, %s20
    %s24 = sphi 0, %s23
    %s40 = sphi 0, %s24
    %s46 = sphi 0, %s48
    %s49 = sphi 0, %s46
    %s50 = sphi 0, %s49
    %s66 = sphi 0, %s50
    %s72 = sphi 0, %s74
    %s75 = sphi 0, %s72
    %s76 = sphi 0, %s75
    %s92 = sphi 0, %s76
    %s98 = sphi 0, %s100
    %s101 = sphi 0, %s98
    %s102 = sphi 0, %s101
    %s118 = sphi 0, %s102
    %s124 = sphi 0, %s126
    %s127 = sphi 0, %s124
    %s128 = sphi 0, %s127
    %s144 = sphi 0, %s128
  $region4: #{module_forward.1} parent=0 // loop_header_branch
    %13 = sbr.rel (%p11) target = $region8
  $region5: #{module_forward.1} parent=0 // loop_body
    %s15 = ssub.s32 %s10, 1
    %s16 = ssub.s32 %s10, 2
    %s17 = sadd.s32 %s10, 1
    %s18 = ssub.s32 %s10, %s17
    %p19 = scmp.eq.s32.totalorder %s18, 0
    %s21 = sadd.s32 %s20, 1
    %s22 = scalar_select %p19, %s20, %s21
    %p25 = pneg %p19
    %p26 = scmp.eq.s32.totalorder %s10, 2
    %p27 = por %p25, %p26
    %p28 = scmp.ne.s32.totalorder %s20, %s23
    %p29 = scmp.eq.s32.totalorder %s10, 0
    %p30 = por %p28, %p29
    %p31 = scmp.ne.s32.totalorder %s20, %s23
    %p32 = scmp.eq.s32.totalorder %s15, 2
    %p33 = por %p31, %p32
    %p34 = scmp.ne.s32.totalorder %s23, %s24
    %p35 = scmp.eq.s32.totalorder %s15, 0
    %p36 = por %p34, %p35
    %p37 = scmp.ne.s32.totalorder %s23, %s24
    %p38 = scmp.eq.s32.totalorder %s16, 2
    %p39 = por %p37, %p38
    %p41 = scmp.ne.s32.totalorder %s24, %s40
    %p42 = scmp.eq.s32.totalorder %s16, 0
    %p43 = por %p41, %p42
    %s44 = ssub.s32 %s10, %s17
    %p45 = scmp.eq.s32.totalorder %s44, 0
    %s47 = sadd.s32 %s46, 1
    %s48 = scalar_select %p45, %s46, %s47
    %p51 = pneg %p45
    %p52 = scmp.eq.s32.totalorder %s10, 2
    %p53 = por %p51, %p52
    %p54 = scmp.ne.s32.totalorder %s46, %s49
    %p55 = scmp.eq.s32.totalorder %s10, 0
    %p56 = por %p54, %p55
    %p57 = scmp.ne.s32.totalorder %s46, %s49
    %p58 = scmp.eq.s32.totalorder %s15, 2
    %p59 = por %p57, %p58
    %p60 = scmp.ne.s32.totalorder %s49, %s50
    %p61 = scmp.eq.s32.totalorder %s15, 0
    %p62 = por %p60, %p61
    %p63 = scmp.ne.s32.totalorder %s49, %s50
    %p64 = scmp.eq.s32.totalorder %s16, 2
    %p65 = por %p63, %p64
    %p67 = scmp.ne.s32.totalorder %s50, %s66
    %p68 = scmp.eq.s32.totalorder %s16, 0
    %p69 = por %p67, %p68
    %s70 = ssub.s32 %s10, %s17
    %p71 = scmp.eq.s32.totalorder %s70, 0
    %s73 = sadd.s32 %s72, 1
    %s74 = scalar_select %p71, %s72, %s73
    %p77 = pneg %p71
    %p78 = scmp.eq.s32.totalorder %s10, 2
    %p79 = por %p77, %p78
    %p80 = scmp.ne.s32.totalorder %s72, %s75
    %p81 = scmp.eq.s32.totalorder %s10, 0
    %p82 = por %p80, %p81
    %p83 = scmp.ne.s32.totalorder %s72, %s75
    %p84 = scmp.eq.s32.totalorder %s15, 2
    %p85 = por %p83, %p84
    %p86 = scmp.ne.s32.totalorder %s75, %s76
    %p87 = scmp.eq.s32.totalorder %s15, 0
    %p88 = por %p86, %p87
    %p89 = scmp.ne.s32.totalorder %s75, %s76
    %p90 = scmp.eq.s32.totalorder %s16, 2
    %p91 = por %p89, %p90
    %p93 = scmp.ne.s32.totalorder %s76, %s92
    %p94 = scmp.eq.s32.totalorder %s16, 0
    %p95 = por %p93, %p94
    %s96 = ssub.s32 %s10, %s17
    %p97 = scmp.eq.s32.totalorder %s96, 0
    %s99 = sadd.s32 %s98, 1
    %s100 = scalar_select %p97, %s98, %s99
    %p103 = pneg %p97
    %p104 = scmp.eq.s32.totalorder %s10, 2
    %p105 = por %p103, %p104
    %p106 = scmp.ne.s32.totalorder %s98, %s101
    %p107 = scmp.eq.s32.totalorder %s10, 0
    %p108 = por %p106, %p107
    %p109 = scmp.ne.s32.totalorder %s98, %s101
    %p110 = scmp.eq.s32.totalorder %s15, 2
    %p111 = por %p109, %p110
    %p112 = scmp.ne.s32.totalorder %s101, %s102
    %p113 = scmp.eq.s32.totalorder %s15, 0
    %p114 = por %p112, %p113
    %p115 = scmp.ne.s32.totalorder %s101, %s102
    %p116 = scmp.eq.s32.totalorder %s16, 2
    %p117 = por %p115, %p116
    %p119 = scmp.ne.s32.totalorder %s102, %s118
    %p120 = scmp.eq.s32.totalorder %s16, 0
    %p121 = por %p119, %p120
    %s122 = ssub.s32 %s10, %s17
    %p123 = scmp.eq.s32.totalorder %s122, 0
    %s125 = sadd.s32 %s124, 1
    %s126 = scalar_select %p123, %s124, %s125
    %p129 = pneg %p123
    %p130 = scmp.eq.s32.totalorder %s10, 2
    %p131 = por %p129, %p130
    %p132 = scmp.ne.s32.totalorder %s124, %s127
    %p133 = scmp.eq.s32.totalorder %s10, 0
    %p134 = por %p132, %p133
    %p135 = scmp.ne.s32.totalorder %s124, %s127
    %p136 = scmp.eq.s32.totalorder %s15, 2
    %p137 = por %p135, %p136
    %p138 = scmp.ne.s32.totalorder %s127, %s128
    %p139 = scmp.eq.s32.totalorder %s15, 0
    %p140 = por %p138, %p139
    %p141 = scmp.ne.s32.totalorder %s127, %s128
    %p142 = scmp.eq.s32.totalorder %s16, 2
    %p143 = por %p141, %p142
    %p145 = scmp.ne.s32.totalorder %s128, %s144
    %p146 = scmp.eq.s32.totalorder %s16, 0
    %p147 = por %p145, %p146
    %p148 = scmp.le.s32.totalorder 1, %s10
    %p149 = scmp.lt.s32.totalorder %s10, 4
    %p150 = pnand %p148, %p149
    %p151 = pneg %p150
    // Predicated region
    $region9: #{module_forward.1} parent=5 // pred_check
      _
    $region10: #{module_forward.1} parent=5 // pred_check_branch
      %153 = sbr.rel (%p150) target = $region12
    $region11: #{module_forward.1} parent=5 // pred_region
      %s154 = ssub.s32 %s10, 1
    $region12: #{module_forward.1} parent=5 // pred_fallthru
      _
    %p155 = scmp.lt.s32.totalorder %s10, 3
    // Predicated region
    $region13: #{module_forward.1} parent=5 // pred_check
      %p156 = pneg %p155
    $region14: #{module_forward.1} parent=5 // pred_check_branch
      %158 = sbr.rel (%p156) target = $region16
    $region15: #{module_forward.1} parent=5 // pred_region
      // Predicated region
      $region17: #{module_forward.1} parent=15 // pred_check
        %p159 = pneg %p30
      $region18: #{module_forward.1} parent=15 // pred_check_branch
        %161 = sbr.rel (%p159) target = $region20
      $region19: #{module_forward.1} parent=15 // pred_region
        %s162 = smul.u32 3, %s10
        %p163 = scmp.lt.s32.totalorder %s162, 8
        %s164 = scalar_select %p163, %s162, 8
        %s165 = smul.addr %s164, 7
        %s166 = smul.addr %s165, 8
        %s167 = scalar_lea.vmem %s0, %s166
        %s168 = smul.u32 3, %s10
      $region20: #{module_forward.1} parent=15 // pred_fallthru
        _
      // Predicated region
      $region21: #{module_forward.1} parent=15 // pred_check
        %p169 = pneg %p56
      $region22: #{module_forward.1} parent=15 // pred_check_branch
        %171 = sbr.rel (%p169) target = $region24
      $region23: #{module_forward.1} parent=15 // pred_region
        %s172 = smul.u32 3, %s10
        %p173 = scmp.lt.s32.totalorder %s172, 8
        %s174 = scalar_select %p173, %s172, 8
        %s175 = smul.addr %s174, 25
        %s176 = scalar_lea.vmem %s1, %s175
        %s177 = smul.u32 3, %s10
      $region24: #{module_forward.1} parent=15 // pred_fallthru
        _
      // Predicated region
      $region25: #{module_forward.1} parent=15 // pred_check
        %p178 = pneg %p82
      $region26: #{module_forward.1} parent=15 // pred_check_branch
        %180 = sbr.rel (%p178) target = $region28
      $region27: #{module_forward.1} parent=15 // pred_region
        %s181 = smul.u32 3, %s10
        %p182 = scmp.lt.s32.totalorder %s181, 8
        %s183 = scalar_select %p182, %s181, 8
        %s184 = scalar_lea.vmem %s2, %s183
        %s185 = smul.u32 3, %s10
      $region28: #{module_forward.1} parent=15 // pred_fallthru
        _
      // Predicated region
      $region29: #{module_forward.1} parent=15 // pred_check
        %p186 = pneg %p108
      $region30: #{module_forward.1} parent=15 // pred_check_branch
        %188 = sbr.rel (%p186) target = $region32
      $region31: #{module_forward.1} parent=15 // pred_region
        %s189 = smul.u32 3, %s10
        %p190 = scmp.lt.s32.totalorder %s189, 8
        %s191 = scalar_select %p190, %s189, 8
        %s192 = scalar_lea.vmem %s3, %s191
        %s193 = smul.u32 3, %s10
      $region32: #{module_forward.1} parent=15 // pred_fallthru
        _
    $region16: #{module_forward.1} parent=5 // pred_fallthru
      _
    %p194 = scmp.le.s32.totalorder 1, %s10
    %p195 = scmp.lt.s32.totalorder %s10, 4
    %p196 = pnand %p194, %p195
    %p197 = pneg %p196
    // Predicated region
    $region33: #{module_forward.1} parent=5 // pred_check
      _
    $region34: #{module_forward.1} parent=5 // pred_check_branch
      %199 = sbr.rel (%p196) target = $region36
    $region35: #{module_forward.1} parent=5 // pred_region
      %s200 = ssub.s32 %s10, 1
      %s201 = smul.u32 3, %s15
      %p202 = scmp.lt.s32.totalorder %s201, 8
      %s203 = scalar_select %p202, %s201, 8
      %s204 = smul.addr %s203, 7
      %s205 = smul.addr %s204, 8
      %s206 = scalar_lea.vmem %s0, %s205
      %p207 = pneg %p36
      %p208 = pneg %p33
      %s209 = smul.u32 3, %s15
      %p210 = scmp.lt.s32.totalorder %s209, 8
      %s211 = scalar_select %p210, %s209, 8
      %s212 = smul.addr %s211, 25
      %s213 = scalar_lea.vmem %s1, %s212
      %p214 = pneg %p62
      %p215 = pneg %p59
      %s216 = smul.u32 3, %s15
      %p217 = scmp.lt.s32.totalorder %s216, 8
      %s218 = scalar_select %p217, %s216, 8
      %s219 = scalar_lea.vmem %s2, %s218
      %p220 = pneg %p88
      %p221 = pneg %p85
      %s222 = smul.u32 3, %s15
      %p223 = scmp.lt.s32.totalorder %s222, 8
      %s224 = scalar_select %p223, %s222, 8
      %s225 = scalar_lea.vmem %s3, %s224
      %p226 = pneg %p114
      %p227 = pneg %p111
      %p228 = pneg %p140
      %p229 = pneg %p137
      %s230 = smul.u32 3, %s15
      %p231 = scmp.lt.s32.totalorder %s230, 8
      %s232 = scalar_select %p231, %s230, 8
      %s233 = smul.addr %s232, 7
      %s234 = smul.addr %s233, 8
      %s235 = scalar_lea.vmem %s4, %s234
      %s236 = smul.u32 3, %s15
      %p237 = scmp.lt.s32.totalorder %s236, 8
      %s238 = scalar_select %p237, %s236, 8
      %s239 = smul.addr %s238, 7
      %s240 = smul.addr %s239, 8
      %s241 = scalar_lea.vmem %s0, %s240
      %s242 = smul.u32 3, %s15
      %s243 = smul.u32 3, %s15
      %p244 = scmp.lt.s32.totalorder %s243, 8
      %s245 = scalar_select %p244, %s243, 8
      %s246 = smul.addr %s245, 25
      %s247 = scalar_lea.vmem %s1, %s246
      %s248 = smul.u32 3, %s15
      %s249 = smul.u32 3, %s15
      %p250 = scmp.lt.s32.totalorder %s249, 8
      %s251 = scalar_select %p250, %s249, 8
      %s252 = scalar_lea.vmem %s2, %s251
      %s253 = smul.u32 3, %s15
      %s254 = smul.u32 3, %s15
      %p255 = scmp.lt.s32.totalorder %s254, 8
      %s256 = scalar_select %p255, %s254, 8
      %s257 = scalar_lea.vmem %s3, %s256
      %s258 = smul.u32 3, %s15
      %s259 = smul.u32 3, %s15
      %p260 = scmp.lt.s32.totalorder %s259, 8
      %s261 = scalar_select %p260, %s259, 8
      %s262 = smul.addr %s261, 7
      %s263 = smul.addr %s262, 8
      %s264 = scalar_lea.vmem %s4, %s263
      %s265 = smul.u32 3, %s15
      %266 = vst [vmem:[#allocation2] sm:$0xff] 0.0
      %267 = vst [vmem:[#allocation2 + $0x8] sm:$0x7] 0.0
      %268 = vst [vmem:[#allocation2 + $0x10] sm:$0xff] 0.0
      %269 = vst [vmem:[#allocation2 + $0x18] sm:$0x7] 0.0
      %270 = vst [vmem:[#allocation2 + $0x20] sm:$0xff] 0.0
      %271 = vst [vmem:[#allocation2 + $0x28] sm:$0x7] 0.0
      %272 = vst [vmem:[#allocation2 + $0x30] sm:$0xff] 0.0
      %273 = vst [vmem:[#allocation2 + $0x38] sm:$0x7] 0.0
      %274 = vst [vmem:[#allocation2 + $0x40] sm:$0xff] 0.0
      %275 = vst [vmem:[#allocation2 + $0x48] sm:$0x7] 0.0
      %276 = vst [vmem:[#allocation2 + $0x50] sm:$0xff] 0.0
      %277 = vst [vmem:[#allocation2 + $0x58] sm:$0x7] 0.0
      %278 = vst [vmem:[#allocation2 + $0x60] sm:$0xff] 0.0
      %279 = vst [vmem:[#allocation2 + $0x68] sm:$0x7] 0.0
      %280 = vst [vmem:[#allocation2 + $0x70] sm:$0xff] 0.0
      %281 = vst [vmem:[#allocation2 + $0x78] sm:$0x7] 0.0
      %282 = vst [vmem:[#allocation2 + $0x80] sm:$0xff] 0.0
      %283 = vst [vmem:[#allocation2 + $0x88] sm:$0x7] 0.0
      %284 = vst [vmem:[#allocation2 + $0x90] sm:$0xff] 0.0
      %285 = vst [vmem:[#allocation2 + $0x98] sm:$0x7] 0.0
      %286 = vst [vmem:[#allocation2 + $0xa0] sm:$0xff] 0.0
      %287 = vst [vmem:[#allocation2 + $0xa8] sm:$0x7] 0.0
      loop: start=0, step=1, limit=3
      $region37: #{module_forward.1} parent=35 // loop_pre_header
        _
      $region38: #{module_forward.1} parent=35 // loop_header
        %s289 = sphi 0, %s293
        %p290 = scmp.ge.s32.totalorder %s289, 3
      $region39: #{module_forward.1} parent=35 // loop_header_branch
        %292 = sbr.rel (%p290) target = $region43
      $region40: #{module_forward.1} parent=35 // loop_body
        %s294 = smul.u32 %s289, 56
        %s295 = scalar_lea.vmem %s241, %s294
        %v296 = vld [vmem:[%s295] sm:$0x7f]
        %v297 = vld [vmem:[%s295 + $0x8] sm:$0x7f]
        %v298 = vld [vmem:[%s295 + $0x10] sm:$0x7f]
        %v299 = vld [vmem:[%s295 + $0x18] sm:$0x7f]
        %v300 = vld [vmem:[%s295 + $0x20] sm:$0x7f]
        %v301 = vld [vmem:[%s295 + $0x28] sm:$0x7f]
        %v302 = vld [vmem:[%s295 + $0x30] sm:$0x7f]
        %v303 = vmax.f32 %v296, 0.0
        %v304 = vmax.f32 %v297, 0.0
        %v305 = vmax.f32 %v298, 0.0
        %v306 = vmax.f32 %v299, 0.0
        %v307 = vmax.f32 %v300, 0.0
        %v308 = vmax.f32 %v301, 0.0
        %v309 = vmax.f32 %v302, 0.0
        %s310 = scalar_lea.vmem [#allocation2], 32
        %311 = vst [vmem:[%s310 + $0x2] sm:$0x7f] %v303
        %312 = vst [vmem:[%s310 + $0x12] sm:$0x7f] %v304
        %313 = vst [vmem:[%s310 + $0x22] sm:$0x7f] %v305
        %314 = vst [vmem:[%s310 + $0x32] sm:$0x7f] %v306
        %315 = vst [vmem:[%s310 + $0x42] sm:$0x7f] %v307
        %316 = vst [vmem:[%s310 + $0x52] sm:$0x7f] %v308
        %317 = vst [vmem:[%s310 + $0x62] sm:$0x7f] %v309
        %s318 = smul.u32 %s289, 25
        %s319 = scalar_lea.vmem %s247, %s318
        %v320 = vld [vmem:[%s319] sm:$0x1]
        %v321 = vld [vmem:[%s319 + $0x1] sm:$0x1]
        %v322 = vld [vmem:[%s319 + $0x2] sm:$0x1]
        %v323 = vld [vmem:[%s319 + $0x3] sm:$0x1]
        %v324 = vld [vmem:[%s319 + $0x4] sm:$0x1]
        %v325 = vld [vmem:[%s319 + $0x5] sm:$0x1]
        %v326 = vld [vmem:[%s319 + $0x6] sm:$0x1]
        %v327 = vld [vmem:[%s319 + $0x7] sm:$0x1]
        %v328 = vld [vmem:[%s319 + $0x8] sm:$0x1]
        %v329 = vld [vmem:[%s319 + $0x9] sm:$0x1]
        %v330 = vld [vmem:[%s319 + $0xa] sm:$0x1]
        %v331 = vld [vmem:[%s319 + $0xb] sm:$0x1]
        %v332 = vld [vmem:[%s319 + $0xc] sm:$0x1]
        %v333 = vld [vmem:[%s319 + $0xd] sm:$0x1]
        %v334 = vld [vmem:[%s319 + $0xe] sm:$0x1]
        %v335 = vld [vmem:[%s319 + $0xf] sm:$0x1]
        %v336 = vld [vmem:[%s319 + $0x10] sm:$0x1]
        %v337 = vld [vmem:[%s319 + $0x11] sm:$0x1]
        %v338 = vld [vmem:[%s319 + $0x12] sm:$0x1]
        %v339 = vld [vmem:[%s319 + $0x13] sm:$0x1]
        %v340 = vld [vmem:[%s319 + $0x14] sm:$0x1]
        %v341 = vld [vmem:[%s319 + $0x15] sm:$0x1]
        %v342 = vld [vmem:[%s319 + $0x16] sm:$0x1]
        %v343 = vld [vmem:[%s319 + $0x17] sm:$0x1]
        %v344 = vld [vmem:[%s319 + $0x18] sm:$0x1]
        %v345 = vld [vmem:[#allocation2] sm:$0x7f]
        %v346 = vld [vmem:[#allocation2 + $0x10] sm:$0x7f]
        %v347 = vld [vmem:[#allocation2 + $0x20] sm:$0x7f]
        %v348 = vld [vmem:[#allocation2 + $0x30] sm:$0x7f]
        %v349 = vld [vmem:[#allocation2 + $0x40] sm:$0x7f]
        %v350 = vld [vmem:[#allocation2 + $0x50] sm:$0x7f]
        %v351 = vld [vmem:[#allocation2 + $0x60] sm:$0x7f]
        %v352 = vld [vmem:[#allocation2 + $0x70] sm:$0x7f]
        %v353 = vld [vmem:[#allocation2 + $0x80] sm:$0x7f]
        %v354 = vld [vmem:[#allocation2 + $0x90] sm:$0x7f]
        %v355 = vld [vmem:[#allocation2 + $0xa0] sm:$0x7f]
        %v357 = vlaneseq
        %v358 = vshrl.u32 %v357, 7
        %v359 = vsub.s32 0, %v358
        %v360 = vrot.slane %v320, %v359
        %v362 = vmul.f32 %v345, %v360
        %v363 = vmul.f32 %v346, %v360
        %v364 = vmul.f32 %v347, %v360
        %v365 = vmul.f32 %v348, %v360
        %v366 = vmul.f32 %v349, %v360
        %v367 = vmul.f32 %v350, %v360
        %v368 = vmul.f32 %v351, %v360
        %v369 = vadd.f32 %v362, 0.0
        %v370 = vadd.f32 %v363, 0.0
        %v371 = vadd.f32 %v364, 0.0
        %v372 = vadd.f32 %v365, 0.0
        %v373 = vadd.f32 %v366, 0.0
        %v374 = vadd.f32 %v367, 0.0
        %v375 = vadd.f32 %v368, 0.0
        %v377 = vlaneseq
        %v378 = vshrl.u32 %v377, 7
        %v379 = vsub.s32 0, %v378
        %v380 = vrot.slane %v321, %v379
        %v382 = vmul.f32 %v346, %v380
        %v383 = vmul.f32 %v347, %v380
        %v384 = vmul.f32 %v348, %v380
        %v385 = vmul.f32 %v349, %v380
        %v386 = vmul.f32 %v350, %v380
        %v387 = vmul.f32 %v351, %v380
        %v388 = vmul.f32 %v352, %v380
        %v389 = vadd.f32 %v369, %v382
        %v390 = vadd.f32 %v370, %v383
        %v391 = vadd.f32 %v371, %v384
        %v392 = vadd.f32 %v372, %v385
        %v393 = vadd.f32 %v373, %v386
        %v394 = vadd.f32 %v374, %v387
        %v395 = vadd.f32 %v375, %v388
        %v397 = vlaneseq
        %v398 = vshrl.u32 %v397, 7
        %v399 = vsub.s32 0, %v398
        %v400 = vrot.slane %v322, %v399
        %v402 = vmul.f32 %v347, %v400
        %v403 = vmul.f32 %v348, %v400
        %v404 = vmul.f32 %v349, %v400
        %v405 = vmul.f32 %v350, %v400
        %v406 = vmul.f32 %v351, %v400
        %v407 = vmul.f32 %v352, %v400
        %v408 = vmul.f32 %v353, %v400
        %v409 = vadd.f32 %v389, %v402
        %v410 = vadd.f32 %v390, %v403
        %v411 = vadd.f32 %v391, %v404
        %v412 = vadd.f32 %v392, %v405
        %v413 = vadd.f32 %v393, %v406
        %v414 = vadd.f32 %v394, %v407
        %v415 = vadd.f32 %v395, %v408
        %v417 = vlaneseq
        %v418 = vshrl.u32 %v417, 7
        %v419 = vsub.s32 0, %v418
        %v420 = vrot.slane %v323, %v419
        %v422 = vmul.f32 %v348, %v420
        %v423 = vmul.f32 %v349, %v420
        %v424 = vmul.f32 %v350, %v420
        %v425 = vmul.f32 %v351, %v420
        %v426 = vmul.f32 %v352, %v420
        %v427 = vmul.f32 %v353, %v420
        %v428 = vmul.f32 %v354, %v420
        %v429 = vadd.f32 %v409, %v422
        %v430 = vadd.f32 %v410, %v423
        %v431 = vadd.f32 %v411, %v424
        %v432 = vadd.f32 %v412, %v425
        %v433 = vadd.f32 %v413, %v426
        %v434 = vadd.f32 %v414, %v427
        %v435 = vadd.f32 %v415, %v428
        %v437 = vlaneseq
        %v438 = vshrl.u32 %v437, 7
        %v439 = vsub.s32 0, %v438
        %v440 = vrot.slane %v324, %v439
        %v442 = vmul.f32 %v349, %v440
        %v443 = vmul.f32 %v350, %v440
        %v444 = vmul.f32 %v351, %v440
        %v445 = vmul.f32 %v352, %v440
        %v446 = vmul.f32 %v353, %v440
        %v447 = vmul.f32 %v354, %v440
        %v448 = vmul.f32 %v355, %v440
        %v449 = vadd.f32 %v429, %v442
        %v450 = vadd.f32 %v430, %v443
        %v451 = vadd.f32 %v431, %v444
        %v452 = vadd.f32 %v432, %v445
        %v453 = vadd.f32 %v433, %v446
        %v454 = vadd.f32 %v434, %v447
        %v455 = vadd.f32 %v435, %v448
        %v456 = vld [vmem:[#allocation2 + $0x1] sm:$0x7f]
        %v457 = vld [vmem:[#allocation2 + $0x11] sm:$0x7f]
        %v458 = vld [vmem:[#allocation2 + $0x21] sm:$0x7f]
        %v459 = vld [vmem:[#allocation2 + $0x31] sm:$0x7f]
        %v460 = vld [vmem:[#allocation2 + $0x41] sm:$0x7f]
        %v461 = vld [vmem:[#allocation2 + $0x51] sm:$0x7f]
        %v462 = vld [vmem:[#allocation2 + $0x61] sm:$0x7f]
        %v463 = vld [vmem:[#allocation2 + $0x71] sm:$0x7f]
        %v464 = vld [vmem:[#allocation2 + $0x81] sm:$0x7f]
        %v465 = vld [vmem:[#allocation2 + $0x91] sm:$0x7f]
        %v466 = vld [vmem:[#allocation2 + $0xa1] sm:$0x7f]
        %v468 = vlaneseq
        %v469 = vshrl.u32 %v468, 7
        %v470 = vsub.s32 0, %v469
        %v471 = vrot.slane %v325, %v470
        %v473 = vmul.f32 %v456, %v471
        %v474 = vmul.f32 %v457, %v471
        %v475 = vmul.f32 %v458, %v471
        %v476 = vmul.f32 %v459, %v471
        %v477 = vmul.f32 %v460, %v471
        %v478 = vmul.f32 %v461, %v471
        %v479 = vmul.f32 %v462, %v471
        %v480 = vadd.f32 %v449, %v473
        %v481 = vadd.f32 %v450, %v474
        %v482 = vadd.f32 %v451, %v475
        %v483 = vadd.f32 %v452, %v476
        %v484 = vadd.f32 %v453, %v477
        %v485 = vadd.f32 %v454, %v478
        %v486 = vadd.f32 %v455, %v479
        %v488 = vlaneseq
        %v489 = vshrl.u32 %v488, 7
        %v490 = vsub.s32 0, %v489
        %v491 = vrot.slane %v326, %v490
        %v493 = vmul.f32 %v457, %v491
        %v494 = vmul.f32 %v458, %v491
        %v495 = vmul.f32 %v459, %v491
        %v496 = vmul.f32 %v460, %v491
        %v497 = vmul.f32 %v461, %v491
        %v498 = vmul.f32 %v462, %v491
        %v499 = vmul.f32 %v463, %v491
        %v500 = vadd.f32 %v480, %v493
        %v501 = vadd.f32 %v481, %v494
        %v502 = vadd.f32 %v482, %v495
        %v503 = vadd.f32 %v483, %v496
        %v504 = vadd.f32 %v484, %v497
        %v505 = vadd.f32 %v485, %v498
        %v506 = vadd.f32 %v486, %v499
        %v508 = vlaneseq
        %v509 = vshrl.u32 %v508, 7
        %v510 = vsub.s32 0, %v509
        %v511 = vrot.slane %v327, %v510
        %v513 = vmul.f32 %v458, %v511
        %v514 = vmul.f32 %v459, %v511
        %v515 = vmul.f32 %v460, %v511
        %v516 = vmul.f32 %v461, %v511
        %v517 = vmul.f32 %v462, %v511
        %v518 = vmul.f32 %v463, %v511
        %v519 = vmul.f32 %v464, %v511
        %v520 = vadd.f32 %v500, %v513
        %v521 = vadd.f32 %v501, %v514
        %v522 = vadd.f32 %v502, %v515
        %v523 = vadd.f32 %v503, %v516
        %v524 = vadd.f32 %v504, %v517
        %v525 = vadd.f32 %v505, %v518
        %v526 = vadd.f32 %v506, %v519
        %v528 = vlaneseq
        %v529 = vshrl.u32 %v528, 7
        %v530 = vsub.s32 0, %v529
        %v531 = vrot.slane %v328, %v530
        %v533 = vmul.f32 %v459, %v531
        %v534 = vmul.f32 %v460, %v531
        %v535 = vmul.f32 %v461, %v531
        %v536 = vmul.f32 %v462, %v531
        %v537 = vmul.f32 %v463, %v531
        %v538 = vmul.f32 %v464, %v531
        %v539 = vmul.f32 %v465, %v531
        %v540 = vadd.f32 %v520, %v533
        %v541 = vadd.f32 %v521, %v534
        %v542 = vadd.f32 %v522, %v535
        %v543 = vadd.f32 %v523, %v536
        %v544 = vadd.f32 %v524, %v537
        %v545 = vadd.f32 %v525, %v538
        %v546 = vadd.f32 %v526, %v539
        %v548 = vlaneseq
        %v549 = vshrl.u32 %v548, 7
        %v550 = vsub.s32 0, %v549
        %v551 = vrot.slane %v329, %v550
        %v553 = vmul.f32 %v460, %v551
        %v554 = vmul.f32 %v461, %v551
        %v555 = vmul.f32 %v462, %v551
        %v556 = vmul.f32 %v463, %v551
        %v557 = vmul.f32 %v464, %v551
        %v558 = vmul.f32 %v465, %v551
        %v559 = vmul.f32 %v466, %v551
        %v560 = vadd.f32 %v540, %v553
        %v561 = vadd.f32 %v541, %v554
        %v562 = vadd.f32 %v542, %v555
        %v563 = vadd.f32 %v543, %v556
        %v564 = vadd.f32 %v544, %v557
        %v565 = vadd.f32 %v545, %v558
        %v566 = vadd.f32 %v546, %v559
        %v567 = vld [vmem:[#allocation2 + $0x2] sm:$0x7f]
        %v568 = vld [vmem:[#allocation2 + $0x12] sm:$0x7f]
        %v569 = vld [vmem:[#allocation2 + $0x22] sm:$0x7f]
        %v570 = vld [vmem:[#allocation2 + $0x32] sm:$0x7f]
        %v571 = vld [vmem:[#allocation2 + $0x42] sm:$0x7f]
        %v572 = vld [vmem:[#allocation2 + $0x52] sm:$0x7f]
        %v573 = vld [vmem:[#allocation2 + $0x62] sm:$0x7f]
        %v574 = vld [vmem:[#allocation2 + $0x72] sm:$0x7f]
        %v575 = vld [vmem:[#allocation2 + $0x82] sm:$0x7f]
        %v576 = vld [vmem:[#allocation2 + $0x92] sm:$0x7f]
        %v577 = vld [vmem:[#allocation2 + $0xa2] sm:$0x7f]
        %v579 = vlaneseq
        %v580 = vshrl.u32 %v579, 7
        %v581 = vsub.s32 0, %v580
        %v582 = vrot.slane %v330, %v581
        %v584 = vmul.f32 %v567, %v582
        %v585 = vmul.f32 %v568, %v582
        %v586 = vmul.f32 %v569, %v582
        %v587 = vmul.f32 %v570, %v582
        %v588 = vmul.f32 %v571, %v582
        %v589 = vmul.f32 %v572, %v582
        %v590 = vmul.f32 %v573, %v582
        %v591 = vadd.f32 %v560, %v584
        %v592 = vadd.f32 %v561, %v585
        %v593 = vadd.f32 %v562, %v586
        %v594 = vadd.f32 %v563, %v587
        %v595 = vadd.f32 %v564, %v588
        %v596 = vadd.f32 %v565, %v589
        %v597 = vadd.f32 %v566, %v590
        %v599 = vlaneseq
        %v600 = vshrl.u32 %v599, 7
        %v601 = vsub.s32 0, %v600
        %v602 = vrot.slane %v331, %v601
        %v604 = vmul.f32 %v568, %v602
        %v605 = vmul.f32 %v569, %v602
        %v606 = vmul.f32 %v570, %v602
        %v607 = vmul.f32 %v571, %v602
        %v608 = vmul.f32 %v572, %v602
        %v609 = vmul.f32 %v573, %v602
        %v610 = vmul.f32 %v574, %v602
        %v611 = vadd.f32 %v591, %v604
        %v612 = vadd.f32 %v592, %v605
        %v613 = vadd.f32 %v593, %v606
        %v614 = vadd.f32 %v594, %v607
        %v615 = vadd.f32 %v595, %v608
        %v616 = vadd.f32 %v596, %v609
        %v617 = vadd.f32 %v597, %v610
        %v619 = vlaneseq
        %v620 = vshrl.u32 %v619, 7
        %v621 = vsub.s32 0, %v620
        %v622 = vrot.slane %v332, %v621
        %v624 = vmul.f32 %v569, %v622
        %v625 = vmul.f32 %v570, %v622
        %v626 = vmul.f32 %v571, %v622
        %v627 = vmul.f32 %v572, %v622
        %v628 = vmul.f32 %v573, %v622
        %v629 = vmul.f32 %v574, %v622
        %v630 = vmul.f32 %v575, %v622
        %v631 = vadd.f32 %v611, %v624
        %v632 = vadd.f32 %v612, %v625
        %v633 = vadd.f32 %v613, %v626
        %v634 = vadd.f32 %v614, %v627
        %v635 = vadd.f32 %v615, %v628
        %v636 = vadd.f32 %v616, %v629
        %v637 = vadd.f32 %v617, %v630
        %v639 = vlaneseq
        %v640 = vshrl.u32 %v639, 7
        %v641 = vsub.s32 0, %v640
        %v642 = vrot.slane %v333, %v641
        %v644 = vmul.f32 %v570, %v642
        %v645 = vmul.f32 %v571, %v642
        %v646 = vmul.f32 %v572, %v642
        %v647 = vmul.f32 %v573, %v642
        %v648 = vmul.f32 %v574, %v642
        %v649 = vmul.f32 %v575, %v642
        %v650 = vmul.f32 %v576, %v642
        %v651 = vadd.f32 %v631, %v644
        %v652 = vadd.f32 %v632, %v645
        %v653 = vadd.f32 %v633, %v646
        %v654 = vadd.f32 %v634, %v647
        %v655 = vadd.f32 %v635, %v648
        %v656 = vadd.f32 %v636, %v649
        %v657 = vadd.f32 %v637, %v650
        %v659 = vlaneseq
        %v660 = vshrl.u32 %v659, 7
        %v661 = vsub.s32 0, %v660
        %v662 = vrot.slane %v334, %v661
        %v664 = vmul.f32 %v571, %v662
        %v665 = vmul.f32 %v572, %v662
        %v666 = vmul.f32 %v573, %v662
        %v667 = vmul.f32 %v574, %v662
        %v668 = vmul.f32 %v575, %v662
        %v669 = vmul.f32 %v576, %v662
        %v670 = vmul.f32 %v577, %v662
        %v671 = vadd.f32 %v651, %v664
        %v672 = vadd.f32 %v652, %v665
        %v673 = vadd.f32 %v653, %v666
        %v674 = vadd.f32 %v654, %v667
        %v675 = vadd.f32 %v655, %v668
        %v676 = vadd.f32 %v656, %v669
        %v677 = vadd.f32 %v657, %v670
        %v678 = vld [vmem:[#allocation2 + $0x3] sm:$0x7f]
        %v679 = vld [vmem:[#allocation2 + $0x13] sm:$0x7f]
        %v680 = vld [vmem:[#allocation2 + $0x23] sm:$0x7f]
        %v681 = vld [vmem:[#allocation2 + $0x33] sm:$0x7f]
        %v682 = vld [vmem:[#allocation2 + $0x43] sm:$0x7f]
        %v683 = vld [vmem:[#allocation2 + $0x53] sm:$0x7f]
        %v684 = vld [vmem:[#allocation2 + $0x63] sm:$0x7f]
        %v685 = vld [vmem:[#allocation2 + $0x73] sm:$0x7f]
        %v686 = vld [vmem:[#allocation2 + $0x83] sm:$0x7f]
        %v687 = vld [vmem:[#allocation2 + $0x93] sm:$0x7f]
        %v688 = vld [vmem:[#allocation2 + $0xa3] sm:$0x7f]
        %v690 = vlaneseq
        %v691 = vshrl.u32 %v690, 7
        %v692 = vsub.s32 0, %v691
        %v693 = vrot.slane %v335, %v692
        %v695 = vmul.f32 %v678, %v693
        %v696 = vmul.f32 %v679, %v693
        %v697 = vmul.f32 %v680, %v693
        %v698 = vmul.f32 %v681, %v693
        %v699 = vmul.f32 %v682, %v693
        %v700 = vmul.f32 %v683, %v693
        %v701 = vmul.f32 %v684, %v693
        %v702 = vadd.f32 %v671, %v695
        %v703 = vadd.f32 %v672, %v696
        %v704 = vadd.f32 %v673, %v697
        %v705 = vadd.f32 %v674, %v698
        %v706 = vadd.f32 %v675, %v699
        %v707 = vadd.f32 %v676, %v700
        %v708 = vadd.f32 %v677, %v701
        %v710 = vlaneseq
        %v711 = vshrl.u32 %v710, 7
        %v712 = vsub.s32 0, %v711
        %v713 = vrot.slane %v336, %v712
        %v715 = vmul.f32 %v679, %v713
        %v716 = vmul.f32 %v680, %v713
        %v717 = vmul.f32 %v681, %v713
        %v718 = vmul.f32 %v682, %v713
        %v719 = vmul.f32 %v683, %v713
        %v720 = vmul.f32 %v684, %v713
        %v721 = vmul.f32 %v685, %v713
        %v722 = vadd.f32 %v702, %v715
        %v723 = vadd.f32 %v703, %v716
        %v724 = vadd.f32 %v704, %v717
        %v725 = vadd.f32 %v705, %v718
        %v726 = vadd.f32 %v706, %v719
        %v727 = vadd.f32 %v707, %v720
        %v728 = vadd.f32 %v708, %v721
        %v730 = vlaneseq
        %v731 = vshrl.u32 %v730, 7
        %v732 = vsub.s32 0, %v731
        %v733 = vrot.slane %v337, %v732
        %v735 = vmul.f32 %v680, %v733
        %v736 = vmul.f32 %v681, %v733
        %v737 = vmul.f32 %v682, %v733
        %v738 = vmul.f32 %v683, %v733
        %v739 = vmul.f32 %v684, %v733
        %v740 = vmul.f32 %v685, %v733
        %v741 = vmul.f32 %v686, %v733
        %v742 = vadd.f32 %v722, %v735
        %v743 = vadd.f32 %v723, %v736
        %v744 = vadd.f32 %v724, %v737
        %v745 = vadd.f32 %v725, %v738
        %v746 = vadd.f32 %v726, %v739
        %v747 = vadd.f32 %v727, %v740
        %v748 = vadd.f32 %v728, %v741
        %v750 = vlaneseq
        %v751 = vshrl.u32 %v750, 7
        %v752 = vsub.s32 0, %v751
        %v753 = vrot.slane %v338, %v752
        %v755 = vmul.f32 %v681, %v753
        %v756 = vmul.f32 %v682, %v753
        %v757 = vmul.f32 %v683, %v753
        %v758 = vmul.f32 %v684, %v753
        %v759 = vmul.f32 %v685, %v753
        %v760 = vmul.f32 %v686, %v753
        %v761 = vmul.f32 %v687, %v753
        %v762 = vadd.f32 %v742, %v755
        %v763 = vadd.f32 %v743, %v756
        %v764 = vadd.f32 %v744, %v757
        %v765 = vadd.f32 %v745, %v758
        %v766 = vadd.f32 %v746, %v759
        %v767 = vadd.f32 %v747, %v760
        %v768 = vadd.f32 %v748, %v761
        %v770 = vlaneseq
        %v771 = vshrl.u32 %v770, 7
        %v772 = vsub.s32 0, %v771
        %v773 = vrot.slane %v339, %v772
        %v775 = vmul.f32 %v682, %v773
        %v776 = vmul.f32 %v683, %v773
        %v777 = vmul.f32 %v684, %v773
        %v778 = vmul.f32 %v685, %v773
        %v779 = vmul.f32 %v686, %v773
        %v780 = vmul.f32 %v687, %v773
        %v781 = vmul.f32 %v688, %v773
        %v782 = vadd.f32 %v762, %v775
        %v783 = vadd.f32 %v763, %v776
        %v784 = vadd.f32 %v764, %v777
        %v785 = vadd.f32 %v765, %v778
        %v786 = vadd.f32 %v766, %v779
        %v787 = vadd.f32 %v767, %v780
        %v788 = vadd.f32 %v768, %v781
        %v789 = vld [vmem:[#allocation2 + $0x4] sm:$0x7f]
        %v790 = vld [vmem:[#allocation2 + $0x14] sm:$0x7f]
        %v791 = vld [vmem:[#allocation2 + $0x24] sm:$0x7f]
        %v792 = vld [vmem:[#allocation2 + $0x34] sm:$0x7f]
        %v793 = vld [vmem:[#allocation2 + $0x44] sm:$0x7f]
        %v794 = vld [vmem:[#allocation2 + $0x54] sm:$0x7f]
        %v795 = vld [vmem:[#allocation2 + $0x64] sm:$0x7f]
        %v796 = vld [vmem:[#allocation2 + $0x74] sm:$0x7f]
        %v797 = vld [vmem:[#allocation2 + $0x84] sm:$0x7f]
        %v798 = vld [vmem:[#allocation2 + $0x94] sm:$0x7f]
        %v799 = vld [vmem:[#allocation2 + $0xa4] sm:$0x7f]
        %v801 = vlaneseq
        %v802 = vshrl.u32 %v801, 7
        %v803 = vsub.s32 0, %v802
        %v804 = vrot.slane %v340, %v803
        %v806 = vmul.f32 %v789, %v804
        %v807 = vmul.f32 %v790, %v804
        %v808 = vmul.f32 %v791, %v804
        %v809 = vmul.f32 %v792, %v804
        %v810 = vmul.f32 %v793, %v804
        %v811 = vmul.f32 %v794, %v804
        %v812 = vmul.f32 %v795, %v804
        %v813 = vadd.f32 %v782, %v806
        %v814 = vadd.f32 %v783, %v807
        %v815 = vadd.f32 %v784, %v808
        %v816 = vadd.f32 %v785, %v809
        %v817 = vadd.f32 %v786, %v810
        %v818 = vadd.f32 %v787, %v811
        %v819 = vadd.f32 %v788, %v812
        %v821 = vlaneseq
        %v822 = vshrl.u32 %v821, 7
        %v823 = vsub.s32 0, %v822
        %v824 = vrot.slane %v341, %v823
        %v826 = vmul.f32 %v790, %v824
        %v827 = vmul.f32 %v791, %v824
        %v828 = vmul.f32 %v792, %v824
        %v829 = vmul.f32 %v793, %v824
        %v830 = vmul.f32 %v794, %v824
        %v831 = vmul.f32 %v795, %v824
        %v832 = vmul.f32 %v796, %v824
        %v833 = vadd.f32 %v813, %v826
        %v834 = vadd.f32 %v814, %v827
        %v835 = vadd.f32 %v815, %v828
        %v836 = vadd.f32 %v816, %v829
        %v837 = vadd.f32 %v817, %v830
        %v838 = vadd.f32 %v818, %v831
        %v839 = vadd.f32 %v819, %v832
        %v841 = vlaneseq
        %v842 = vshrl.u32 %v841, 7
        %v843 = vsub.s32 0, %v842
        %v844 = vrot.slane %v342, %v843
        %v846 = vmul.f32 %v791, %v844
        %v847 = vmul.f32 %v792, %v844
        %v848 = vmul.f32 %v793, %v844
        %v849 = vmul.f32 %v794, %v844
        %v850 = vmul.f32 %v795, %v844
        %v851 = vmul.f32 %v796, %v844
        %v852 = vmul.f32 %v797, %v844
        %v853 = vadd.f32 %v833, %v846
        %v854 = vadd.f32 %v834, %v847
        %v855 = vadd.f32 %v835, %v848
        %v856 = vadd.f32 %v836, %v849
        %v857 = vadd.f32 %v837, %v850
        %v858 = vadd.f32 %v838, %v851
        %v859 = vadd.f32 %v839, %v852
        %v861 = vlaneseq
        %v862 = vshrl.u32 %v861, 7
        %v863 = vsub.s32 0, %v862
        %v864 = vrot.slane %v343, %v863
        %v866 = vmul.f32 %v792, %v864
        %v867 = vmul.f32 %v793, %v864
        %v868 = vmul.f32 %v794, %v864
        %v869 = vmul.f32 %v795, %v864
        %v870 = vmul.f32 %v796, %v864
        %v871 = vmul.f32 %v797, %v864
        %v872 = vmul.f32 %v798, %v864
        %v873 = vadd.f32 %v853, %v866
        %v874 = vadd.f32 %v854, %v867
        %v875 = vadd.f32 %v855, %v868
        %v876 = vadd.f32 %v856, %v869
        %v877 = vadd.f32 %v857, %v870
        %v878 = vadd.f32 %v858, %v871
        %v879 = vadd.f32 %v859, %v872
        %v881 = vlaneseq
        %v882 = vshrl.u32 %v881, 7
        %v883 = vsub.s32 0, %v882
        %v884 = vrot.slane %v344, %v883
        %v886 = vmul.f32 %v793, %v884
        %v887 = vmul.f32 %v794, %v884
        %v888 = vmul.f32 %v795, %v884
        %v889 = vmul.f32 %v796, %v884
        %v890 = vmul.f32 %v797, %v884
        %v891 = vmul.f32 %v798, %v884
        %v892 = vmul.f32 %v799, %v884
        %v893 = vadd.f32 %v873, %v886
        %v894 = vadd.f32 %v874, %v887
        %v895 = vadd.f32 %v875, %v888
        %v896 = vadd.f32 %v876, %v889
        %v897 = vadd.f32 %v877, %v890
        %v898 = vadd.f32 %v878, %v891
        %v899 = vadd.f32 %v879, %v892
        %vm900 = vcmask 1046528
        %v901 = vsel %vm900, %v893, 0.0
        %v902 = vsel %vm900, %v894, 0.0
        %v903 = vadd.f32 %v901, %v902
        %v904 = vsel %vm900, %v895, 0.0
        %v905 = vadd.f32 %v903, %v904
        %v906 = vsel %vm900, %v896, 0.0
        %v907 = vadd.f32 %v905, %v906
        %v908 = vsel %vm900, %v897, 0.0
        %v909 = vadd.f32 %v907, %v908
        %v910 = vsel %vm900, %v898, 0.0
        %v911 = vadd.f32 %v909, %v910
        %v912 = vsel %vm900, %v899, 0.0
        %v913 = vadd.f32 %v911, %v912
        %v914 = vrot.slane %v913, 4
        %v915 = vadd.f32 %v913, %v914
        %v916 = vrot.slane %v915, 2
        %v917 = vadd.f32 %v915, %v916
        %v918 = vrot.slane %v917, 1
        %v919 = vadd.f32 %v917, %v918
        %v920 = vmul.f32 %v893, %v893
        %v921 = vmul.f32 %v894, %v894
        %v922 = vmul.f32 %v895, %v895
        %v923 = vmul.f32 %v896, %v896
        %v924 = vmul.f32 %v897, %v897
        %v925 = vmul.f32 %v898, %v898
        %v926 = vmul.f32 %v899, %v899
        %v927 = vsel %vm900, %v920, 0.0
        %v928 = vsel %vm900, %v921, 0.0
        %v929 = vadd.f32 %v927, %v928
        %v930 = vsel %vm900, %v922, 0.0
        %v931 = vadd.f32 %v929, %v930
        %v932 = vsel %vm900, %v923, 0.0
        %v933 = vadd.f32 %v931, %v932
        %v934 = vsel %vm900, %v924, 0.0
        %v935 = vadd.f32 %v933, %v934
        %v936 = vsel %vm900, %v925, 0.0
        %v937 = vadd.f32 %v935, %v936
        %v938 = vsel %vm900, %v926, 0.0
        %v939 = vadd.f32 %v937, %v938
        %v940 = vrot.slane %v939, 4
        %v941 = vadd.f32 %v939, %v940
        %v942 = vrot.slane %v941, 2
        %v943 = vadd.f32 %v941, %v942
        %v944 = vrot.slane %v943, 1
        %v945 = vadd.f32 %v943, %v944
        %v946 = vmul.f32 %v919, 0.020408163
        %v947 = vmul.f32 %v945, 0.020408163
        %v948 = vmul.f32 %v946, %v946
        %v949 = vsub.f32 %v947, %v948
        %v950 = vmax.f32 %v949, 0.0
        %v951 = vadd.f32 %v950, 1e-05
        %v952 = vrsqrt.pop %v951
        %s953 = scalar_lea.vmem %s252, %s289
        %v954 = vld [vmem:[%s953] sm:$0x1]
        %v955 = vmul.f32 %v952, %v954
        %s956 = scalar_lea.vmem %s257, %s289
        %v957 = vld [vmem:[%s956] sm:$0x1]
        %v958 = vmul.f32 %v946, %v955
        %v959 = vsub.f32 %v957, %v958
        %v960 = vlaneseq
        %v961 = vshrl.u32 %v960, 7
        %v962 = vsub.s32 0, %v961
        %v963 = vrot.slane %v955, %v962
        %v964 = vmul.f32 %v893, %v963
        %v965 = vmul.f32 %v894, %v963
        %v966 = vmul.f32 %v895, %v963
        %v967 = vmul.f32 %v896, %v963
        %v968 = vmul.f32 %v897, %v963
        %v969 = vmul.f32 %v898, %v963
        %v970 = vmul.f32 %v899, %v963
        %v972 = vlaneseq
        %v973 = vshrl.u32 %v972, 7
        %v974 = vsub.s32 0, %v973
        %v975 = vrot.slane %v959, %v974
        %v977 = vadd.f32 %v964, %v975
        %v978 = vadd.f32 %v965, %v975
        %v979 = vadd.f32 %v966, %v975
        %v980 = vadd.f32 %v967, %v975
        %v981 = vadd.f32 %v968, %v975
        %v982 = vadd.f32 %v969, %v975
        %v983 = vadd.f32 %v970, %v975
        %s984 = scalar_lea.vmem %s264, %s294
        %985 = vst [vmem:[%s984] sm:$0x7f] %v977
        %986 = vst [vmem:[%s984 + $0x8] sm:$0x7f] %v978
        %987 = vst [vmem:[%s984 + $0x10] sm:$0x7f] %v979
        %988 = vst [vmem:[%s984 + $0x18] sm:$0x7f] %v980
        %989 = vst [vmem:[%s984 + $0x20] sm:$0x7f] %v981
        %990 = vst [vmem:[%s984 + $0x28] sm:$0x7f] %v982
        %991 = vst [vmem:[%s984 + $0x30] sm:$0x7f] %v983
      $region41: #{module_forward.1} parent=35 // loop_footer
        %s293 = sadd.s32 1, %s289
      $region42: #{module_forward.1} parent=35 // loop_footer_branch
        %288 = sbr.rel target = $region38
      $region43: #{module_forward.1} parent=35 // loop_exit
        _
      %s992 = smul.u32 3, %s15
      %p993 = scmp.lt.s32.totalorder %s992, 8
      %s994 = scalar_select %p993, %s992, 8
      %s995 = smul.addr %s994, 7
      %s996 = smul.addr %s995, 8
      %s997 = scalar_lea.vmem %s4, %s996
      // Predicated region
      $region44: #{module_forward.1} parent=35 // pred_check
        %p998 = pneg %p137
      $region45: #{module_forward.1} parent=35 // pred_check_branch
        %1000 = sbr.rel (%p998) target = $region47
      $region46: #{module_forward.1} parent=35 // pred_region
        %s1001 = smul.u32 3, %s15
      $region47: #{module_forward.1} parent=35 // pred_fallthru
        _
    $region36: #{module_forward.1} parent=5 // pred_fallthru
      _
    %p1002 = scmp.le.s32.totalorder 2, %s10
    // Predicated region
    $region48: #{module_forward.1} parent=5 // pred_check
      %p1003 = pneg %p1002
    $region49: #{module_forward.1} parent=5 // pred_check_branch
      %1005 = sbr.rel (%p1003) target = $region51
    $region50: #{module_forward.1} parent=5 // pred_region
      %s1006 = ssub.s32 %s10, 2
      // Predicated region
      $region52: #{module_forward.1} parent=50 // pred_check
        %p1007 = pneg %p143
      $region53: #{module_forward.1} parent=50 // pred_check_branch
        %1009 = sbr.rel (%p1007) target = $region55
      $region54: #{module_forward.1} parent=50 // pred_region
        %s1010 = smul.u32 3, %s16
        %p1011 = scmp.lt.s32.totalorder %s1010, 8
        %s1012 = scalar_select %p1011, %s1010, 8
        %s1013 = smul.addr %s1012, 7
        %s1014 = smul.addr %s1013, 8
        %s1015 = scalar_lea.vmem %s4, %s1014
      $region55: #{module_forward.1} parent=50 // pred_fallthru
        _
    $region51: #{module_forward.1} parent=5 // pred_fallthru
      _
  $region6: #{module_forward.1} parent=0 // loop_footer
    %s14 = sadd.s32 1, %s10
  $region7: #{module_forward.1} parent=0 // loop_footer_branch
    %9 = sbr.rel target = $region3
  $region8: #{module_forward.1} parent=0 // loop_exit
    _

</llo_original>
